<compile_context>
chip_gen: v6e
topology: v6e:2x2x1
jax: 0.10.0
libtpu: 0.0.40
codegen_flags: <defaults>
</compile_context>

<pallas_src>
import functools

import jax
import jax.numpy as jnp
from jax.experimental import pallas as pl
from jax.experimental.pallas import tpu as pltpu


def _relu6(y):
    return jnp.minimum(jnp.maximum(y, 0.0), 6.0)


# --------------------------- fused block kernel -----------------------------
def _fused_kernel(*refs, stride, h, w, ho, wo, hidden, has_expand, has_res):
    """Processes one batch element per grid step; hidden stays in VMEM."""
    it = iter(refs)
    x_ref = next(it)                         # (1, H, W, Cin)     NHWC input
    if has_expand:
        we_ref = next(it)                    # (Cin, hidden)      BN scale folded
        be_ref = next(it)                    # (1, hidden)
    wd_ref = next(it)                        # (3, 3, hidden)     BN scale folded
    bd_ref = next(it)                        # (1, 1, hidden)
    wpt_ref = next(it)                       # (oup, hidden)      transposed, folded
    bp_ref = next(it)                        # (oup, 1)
    res_ref = next(it) if has_res else None  # (1, oup, H*W)      NCHW-flat residual
    o_ref = next(it)                         # (1, oup, Ho*Wo)    NCHW-flat output
    pad_ref = next(it)                       # (H+2, W+2, hidden) VMEM scratch

    cin = x_ref.shape[-1]

    # -- stage 1: 1x1 expand conv (+folded BN) + ReLU6, written into the
    #    zero-padded VMEM scratch so the depthwise halo never touches HBM.
    pad_ref[...] = jnp.zeros_like(pad_ref)
    xm = x_ref[0].reshape(h * w, cin)
    if has_expand:
        h1 = jnp.dot(xm, we_ref[...], preferred_element_type=jnp.float32)
        h1 = _relu6(h1 + be_ref[...])
    else:
        h1 = xm.astype(jnp.float32)          # expand_ratio == 1: hidden == inp
    pad_ref[1:1 + h, 1:1 + w, :] = h1.reshape(h, w, hidden)

    # -- stage 2: 3x3 depthwise conv (+folded BN) + ReLU6 (hidden in VMEM).
    wd = wd_ref[...]
    acc = jnp.zeros((ho, wo, hidden), jnp.float32)
    for kh in range(3):
        for kw in range(3):
            if stride == 1:
                tap = pad_ref[kh:kh + ho, kw:kw + wo, :]
            else:
                # strided ref read: taps at kh + stride*i / kw + stride*j
                tap = pad_ref[pl.ds(kh, ho, stride=stride),
                              pl.ds(kw, wo, stride=stride), :]
            acc = acc + tap * wd[kh, kw]
    hd = _relu6(acc + bd_ref[...])

    # -- stage 3: 1x1 projection (+folded BN) (+residual), emitted transposed
    #    as (oup, Ho*Wo) == NCHW-flat -> lane-dense stores (Ho*Wo % 128 == 0).
    hd2 = hd.reshape(ho * wo, hidden)
    out = jax.lax.dot_general(
        wpt_ref[...], hd2,
        dimension_numbers=(((1,), (1,)), ((), ())),   # contract hidden (A @ B.T)
        preferred_element_type=jnp.float32)           # (oup, Ho*Wo)
    out = out + bp_ref[...]
    if has_res:
        out = out + res_ref[0]
    o_ref[0] = out.astype(o_ref.dtype)


# ----------------------------- public wrapper --------------------------------
def inverted_residual_forward(x_nchw, params, *, inp, oup, stride, expand_ratio):
    assert stride in (1, 2)
    hidden = int(round(inp * expand_ratio))
    has_expand = expand_ratio != 1
    use_res = (stride == 1) and (inp == oup)

    n, cin, h, w = x_nchw.shape
    assert cin == inp
    ho = (h + 2 - 3) // stride + 1
    wo = (w + 2 - 3) // stride + 1
    p_out = ho * wo

    x = x_nchw.astype(jnp.float32)
    x_nhwc = jnp.transpose(x, (0, 2, 3, 1))        # small boundary transpose only

    args = [x_nhwc]
    in_specs = [pl.BlockSpec((1, h, w, inp), lambda b: (b, 0, 0, 0))]

    # BatchNorm scale folded into the conv weights; only bias stays separate.
    if has_expand:
        we = (params["w_expand"] * params["s1"][None, :]).astype(jnp.float32)
        be = params["b1"].reshape(1, hidden).astype(jnp.float32)
        args += [we, be]
        in_specs += [pl.BlockSpec((inp, hidden), lambda b: (0, 0)),
                     pl.BlockSpec((1, hidden), lambda b: (0, 0))]

    wd = (params["w_dw"] * params["s2"][None, None, :]).astype(jnp.float32)
    bd = params["b2"].reshape(1, 1, hidden).astype(jnp.float32)
    wpt = (params["w_proj"] * params["s3"][None, :]).T.astype(jnp.float32)  # (oup, hidden)
    bp = params["b3"].reshape(oup, 1).astype(jnp.float32)
    args += [wd, bd, wpt, bp]
    in_specs += [pl.BlockSpec((3, 3, hidden), lambda b: (0, 0, 0)),
                 pl.BlockSpec((1, 1, hidden), lambda b: (0, 0, 0)),
                 pl.BlockSpec((oup, hidden), lambda b: (0, 0)),
                 pl.BlockSpec((oup, 1), lambda b: (0, 0))]

    if use_res:
        args += [x.reshape(n, oup, h * w)]          # residual already NCHW-flat
        in_specs += [pl.BlockSpec((1, oup, h * w), lambda b: (b, 0, 0))]

    kern = functools.partial(
        _fused_kernel, stride=stride, h=h, w=w, ho=ho, wo=wo, hidden=hidden,
        has_expand=has_expand, has_res=use_res)

    out3 = pl.pallas_call(
        kern,
        out_shape=jax.ShapeDtypeStruct((n, oup, p_out), jnp.float32),
        grid_spec=pltpu.PrefetchScalarGridSpec(
            num_scalar_prefetch=0,
            grid=(n,),
            in_specs=in_specs,
            out_specs=pl.BlockSpec((1, oup, p_out), lambda b: (b, 0, 0)),
            scratch_shapes=[pltpu.VMEM((h + 2, w + 2, hidden), jnp.float32)],
        ),
        compiler_params=pltpu.CompilerParams(
            dimension_semantics=("parallel",)),
    )(*args)

    return out3.reshape(n, oup, ho, wo)             # already NCHW; no transpose


# -------------------- parameter init (deterministic, synthetic) -------------
def init_inverted_residual_params(key, inp, oup, expand_ratio):
    hidden = int(round(inp * expand_ratio))
    keys = jax.random.split(key, 12)
    eps = 1e-5

    def bn(kg, kb, km, kv, c):
        # inference-mode BatchNorm folded to per-channel scale/bias
        gamma = jax.random.uniform(kg, (c,), jnp.float32, 0.5, 1.5)
        beta = jax.random.normal(kb, (c,), jnp.float32) * 0.1
        mean = jax.random.normal(km, (c,), jnp.float32) * 0.1
        var = jax.random.uniform(kv, (c,), jnp.float32, 0.5, 1.5)
        scale = gamma / jnp.sqrt(var + eps)
        bias = beta - mean * scale
        return scale, bias

    p = {}
    if expand_ratio != 1:
        p["w_expand"] = jax.random.normal(keys[0], (inp, hidden), jnp.float32) * 0.1
        p["s1"], p["b1"] = bn(keys[1], keys[2], keys[3], keys[4], hidden)
    p["w_dw"] = jax.random.normal(keys[5], (3, 3, hidden), jnp.float32) * 0.1
    p["s2"], p["b2"] = bn(keys[6], keys[7], keys[8], keys[9], hidden)
    p["w_proj"] = jax.random.normal(keys[10], (hidden, oup), jnp.float32) * 0.1
    p["s3"], p["b3"] = bn(*jax.random.split(keys[11], 4), oup)
    return p, hidden


# -------------------- pure-JAX reference (for verification) -----------------
def reference_forward(x_nchw, params, *, inp, oup, stride, expand_ratio):
    hidden = int(round(inp * expand_ratio))
    use_res = (stride == 1) and (inp == oup)
    x = jnp.transpose(x_nchw, (0, 2, 3, 1)).astype(jnp.float32)
    dn = ("NHWC", "HWIO", "NHWC")
    h = x
    if expand_ratio != 1:
        w1 = params["w_expand"].reshape(1, 1, inp, hidden)
        h = jax.lax.conv_general_dilated(x, w1, (1, 1), "VALID",
                                         dimension_numbers=dn)
        h = jnp.clip(h * params["s1"] + params["b1"], 0.0, 6.0)
    wd = params["w_dw"][:, :, None, :]  # (3,3,1,hidden)
    hd = jax.lax.conv_general_dilated(h, wd, (stride, stride),
                                      ((1, 1), (1, 1)),
                                      dimension_numbers=dn,
                                      feature_group_count=hidden)
    hd = jnp.clip(hd * params["s2"] + params["b2"], 0.0, 6.0)
    w3 = params["w_proj"].reshape(1, 1, hidden, oup)
    out = jax.lax.conv_general_dilated(hd, w3, (1, 1), "VALID",
                                       dimension_numbers=dn)
    out = out * params["s3"] + params["b3"]
    if use_res:
        out = out + x
    return jnp.transpose(out, (0, 3, 1, 2))


if __name__ == "__main__":
    key = jax.random.PRNGKey(0)
    kx, kp1, kp2 = jax.random.split(key, 3)

    n, h, w = 2, 16, 16
    x = jax.random.normal(kx, (n, 8, h, w), jnp.float32)  # NCHW like PyTorch

    # Config A: InvertedResidual(inp=8, oup=8, stride=1, expand_ratio=4) -> residual path
    inp, oup, stride, t = 8, 8, 1, 4
    params, _ = init_inverted_residual_params(kp1, inp, oup, t)
    out = jax.block_until_ready(
        inverted_residual_forward(x, params, inp=inp, oup=oup,
                                  stride=stride, expand_ratio=t))
    ref = reference_forward(x, params, inp=inp, oup=oup,
                            stride=stride, expand_ratio=t)
    assert out.shape == (n, oup, h, w), out.shape
    assert jnp.allclose(out, ref, atol=5e-4, rtol=5e-4), \
        float(jnp.max(jnp.abs(out - ref)))

    # Config B: InvertedResidual(inp=8, oup=16, stride=1, expand_ratio=1) -> no expand/residual
    inp2, oup2, t2 = 8, 16, 1
    params2, _ = init_inverted_residual_params(kp2, inp2, oup2, t2)
    out2 = jax.block_until_ready(
        inverted_residual_forward(x, params2, inp=inp2, oup=oup2,
                                  stride=1, expand_ratio=t2))
    ref2 = reference_forward(x, params2, inp=inp2, oup=oup2,
                             stride=1, expand_ratio=t2)
    assert out2.shape == (n, oup2, h, w), out2.shape
    assert jnp.allclose(out2, ref2, atol=5e-4, rtol=5e-4), \
        float(jnp.max(jnp.abs(out2 - ref2)))

    print("KERNEL_OK")
</pallas_src>

<mosaic_0001>
module attributes {stable_mosaic.version = 11 : i64} {
  func.func @_fused_kernel(%arg0: i32, %arg1: memref<1x16x16x8xf32, #tpu.memory_space<vmem>>, %arg2: memref<8x32xf32, #tpu.memory_space<vmem>>, %arg3: memref<1x32xf32, #tpu.memory_space<vmem>>, %arg4: memref<3x3x32xf32, #tpu.memory_space<vmem>>, %arg5: memref<1x1x32xf32, #tpu.memory_space<vmem>>, %arg6: memref<8x32xf32, #tpu.memory_space<vmem>>, %arg7: memref<8x1xf32, #tpu.memory_space<vmem>>, %arg8: memref<1x8x256xf32, #tpu.memory_space<vmem>>, %arg9: memref<1x8x256xf32, #tpu.memory_space<vmem>>, %arg10: memref<18x18x32xf32, #tpu.memory_space<vmem>>) attributes {dimension_semantics = [#tpu.dimension_semantics<parallel>], iteration_bounds = array<i64: 2>, scalar_prefetch = 0 : i64, scratch_operands = 1 : i64, tpu.core_type = #tpu.core_type<tc>, window_params = [{transform_indices = @transform_0, window_bounds = array<i64: 1, 16, 16, 8>}, {pipeline_mode = #tpu.pipeline_mode<synchronous>, transform_indices = @transform_1, window_bounds = array<i64: 8, 32>}, {pipeline_mode = #tpu.pipeline_mode<synchronous>, transform_indices = @transform_2, window_bounds = array<i64: 1, 32>}, {pipeline_mode = #tpu.pipeline_mode<synchronous>, transform_indices = @transform_3, window_bounds = array<i64: 3, 3, 32>}, {pipeline_mode = #tpu.pipeline_mode<synchronous>, transform_indices = @transform_4, window_bounds = array<i64: 1, 1, 32>}, {pipeline_mode = #tpu.pipeline_mode<synchronous>, transform_indices = @transform_5, window_bounds = array<i64: 8, 32>}, {pipeline_mode = #tpu.pipeline_mode<synchronous>, transform_indices = @transform_6, window_bounds = array<i64: 8, 1>}, {transform_indices = @transform_7, window_bounds = array<i64: 1, 8, 256>}, {transform_indices = @transform_8, window_bounds = array<i64: 1, 8, 256>}]} {
    %cst = arith.constant 0.000000e+00 : f32
    %0 = vector.broadcast %cst : f32 to vector<18x18x32xf32>
    %c0 = arith.constant 0 : index
    %c0_0 = arith.constant 0 : index
    %c0_1 = arith.constant 0 : index
    %1 = vector.load %arg10[%c0, %c0_0, %c0_1] : memref<18x18x32xf32, #tpu.memory_space<vmem>>, vector<18x18x32xf32>
    tpu.vector_store %arg10[%c0, %c0_0, %c0_1], %0 {strides = array<i32>} : memref<18x18x32xf32, #tpu.memory_space<vmem>>, vector<18x18x32xf32>,
    %c0_2 = arith.constant 0 : index
    %c0_3 = arith.constant 0 : index
    %c0_4 = arith.constant 0 : index
    %c0_5 = arith.constant 0 : index
    %2 = vector.load %arg1[%c0_2, %c0_3, %c0_4, %c0_5] : memref<1x16x16x8xf32, #tpu.memory_space<vmem>>, vector<1x16x16x8xf32>
    %3 = vector.shape_cast %2 : vector<1x16x16x8xf32> to vector<16x16x8xf32>
    %4 = vector.shape_cast %3 : vector<16x16x8xf32> to vector<256x8xf32>
    %c0_6 = arith.constant 0 : index
    %c0_7 = arith.constant 0 : index
    %5 = vector.load %arg2[%c0_6, %c0_7] : memref<8x32xf32, #tpu.memory_space<vmem>>, vector<8x32xf32>
    %cst_8 = arith.constant dense<0.000000e+00> : vector<256x32xf32>
    %6 = tpu.matmul %4, %5, %cst_8 {dimension_numbers = #tpu.dot_dimension_numbers<[1], [0], [0], [1], [0, 0, 1, 1], [], []>} : vector<256x8xf32>, vector<8x32xf32>, vector<256x32xf32> -> vector<256x32xf32>
    %c0_9 = arith.constant 0 : index
    %c0_10 = arith.constant 0 : index
    %7 = vector.load %arg3[%c0_9, %c0_10] : memref<1x32xf32, #tpu.memory_space<vmem>>, vector<1x32xf32>
    %8 = vector.broadcast %7 : vector<1x32xf32> to vector<256x32xf32>
    %9 = arith.addf %6, %8 : vector<256x32xf32>
    %cst_11 = arith.constant 0.000000e+00 : f32
    %10 = vector.broadcast %cst_11 : f32 to vector<256x32xf32>
    %11 = arith.maximumf %9, %10 : vector<256x32xf32>
    %cst_12 = arith.constant 6.000000e+00 : f32
    %12 = vector.broadcast %cst_12 : f32 to vector<256x32xf32>
    %13 = arith.minimumf %11, %12 : vector<256x32xf32>
    %14 = vector.shape_cast %13 : vector<256x32xf32> to vector<16x16x32xf32>
    %c1 = arith.constant 1 : index
    %c1_13 = arith.constant 1 : index
    %c0_14 = arith.constant 0 : index
    %15 = vector.load %arg10[%c1, %c1_13, %c0_14] : memref<18x18x32xf32, #tpu.memory_space<vmem>>, vector<16x16x32xf32>
    tpu.vector_store %arg10[%c1, %c1_13, %c0_14], %14 {strides = array<i32>} : memref<18x18x32xf32, #tpu.memory_space<vmem>>, vector<16x16x32xf32>,
    %c0_15 = arith.constant 0 : index
    %c0_16 = arith.constant 0 : index
    %c0_17 = arith.constant 0 : index
    %16 = vector.load %arg4[%c0_15, %c0_16, %c0_17] : memref<3x3x32xf32, #tpu.memory_space<vmem>>, vector<3x3x32xf32>
    %cst_18 = arith.constant 0.000000e+00 : f32
    %17 = vector.broadcast %cst_18 : f32 to vector<16x16x32xf32>
    %c0_19 = arith.constant 0 : index
    %c0_20 = arith.constant 0 : index
    %c0_21 = arith.constant 0 : index
    %18 = vector.load %arg10[%c0_19, %c0_20, %c0_21] : memref<18x18x32xf32, #tpu.memory_space<vmem>>, vector<16x16x32xf32>
    %19 = vector.extract_strided_slice %16 {offsets = [0, 0, 0], sizes = [1, 1, 32], strides = [1, 1, 1]} : vector<3x3x32xf32> to vector<1x1x32xf32>
    %20 = vector.shape_cast %19 : vector<1x1x32xf32> to vector<32xf32>
    %21 = vector.shape_cast %20 : vector<32xf32> to vector<1x1x32xf32>
    %22 = vector.broadcast %21 : vector<1x1x32xf32> to vector<16x16x32xf32>
    %23 = arith.mulf %18, %22 : vector<16x16x32xf32>
    %24 = arith.addf %17, %23 : vector<16x16x32xf32>
    %c0_22 = arith.constant 0 : index
    %c1_23 = arith.constant 1 : index
    %c0_24 = arith.constant 0 : index
    %25 = vector.load %arg10[%c0_22, %c1_23, %c0_24] : memref<18x18x32xf32, #tpu.memory_space<vmem>>, vector<16x16x32xf32>
    %26 = vector.extract_strided_slice %16 {offsets = [0, 1, 0], sizes = [1, 1, 32], strides = [1, 1, 1]} : vector<3x3x32xf32> to vector<1x1x32xf32>
    %27 = vector.shape_cast %26 : vector<1x1x32xf32> to vector<32xf32>
    %28 = vector.shape_cast %27 : vector<32xf32> to vector<1x1x32xf32>
    %29 = vector.broadcast %28 : vector<1x1x32xf32> to vector<16x16x32xf32>
    %30 = arith.mulf %25, %29 : vector<16x16x32xf32>
    %31 = arith.addf %24, %30 : vector<16x16x32xf32>
    %c0_25 = arith.constant 0 : index
    %c2 = arith.constant 2 : index
    %c0_26 = arith.constant 0 : index
    %32 = vector.load %arg10[%c0_25, %c2, %c0_26] : memref<18x18x32xf32, #tpu.memory_space<vmem>>, vector<16x16x32xf32>
    %33 = vector.extract_strided_slice %16 {offsets = [0, 2, 0], sizes = [1, 1, 32], strides = [1, 1, 1]} : vector<3x3x32xf32> to vector<1x1x32xf32>
    %34 = vector.shape_cast %33 : vector<1x1x32xf32> to vector<32xf32>
    %35 = vector.shape_cast %34 : vector<32xf32> to vector<1x1x32xf32>
    %36 = vector.broadcast %35 : vector<1x1x32xf32> to vector<16x16x32xf32>
    %37 = arith.mulf %32, %36 : vector<16x16x32xf32>
    %38 = arith.addf %31, %37 : vector<16x16x32xf32>
    %c1_27 = arith.constant 1 : index
    %c0_28 = arith.constant 0 : index
    %c0_29 = arith.constant 0 : index
    %39 = vector.load %arg10[%c1_27, %c0_28, %c0_29] : memref<18x18x32xf32, #tpu.memory_space<vmem>>, vector<16x16x32xf32>
    %40 = vector.extract_strided_slice %16 {offsets = [1, 0, 0], sizes = [1, 1, 32], strides = [1, 1, 1]} : vector<3x3x32xf32> to vector<1x1x32xf32>
    %41 = vector.shape_cast %40 : vector<1x1x32xf32> to vector<32xf32>
    %42 = vector.shape_cast %41 : vector<32xf32> to vector<1x1x32xf32>
    %43 = vector.broadcast %42 : vector<1x1x32xf32> to vector<16x16x32xf32>
    %44 = arith.mulf %39, %43 : vector<16x16x32xf32>
    %45 = arith.addf %38, %44 : vector<16x16x32xf32>
    %c1_30 = arith.constant 1 : index
    %c1_31 = arith.constant 1 : index
    %c0_32 = arith.constant 0 : index
    %46 = vector.load %arg10[%c1_30, %c1_31, %c0_32] : memref<18x18x32xf32, #tpu.memory_space<vmem>>, vector<16x16x32xf32>
    %47 = vector.extract_strided_slice %16 {offsets = [1, 1, 0], sizes = [1, 1, 32], strides = [1, 1, 1]} : vector<3x3x32xf32> to vector<1x1x32xf32>
    %48 = vector.shape_cast %47 : vector<1x1x32xf32> to vector<32xf32>
    %49 = vector.shape_cast %48 : vector<32xf32> to vector<1x1x32xf32>
    %50 = vector.broadcast %49 : vector<1x1x32xf32> to vector<16x16x32xf32>
    %51 = arith.mulf %46, %50 : vector<16x16x32xf32>
    %52 = arith.addf %45, %51 : vector<16x16x32xf32>
    %c1_33 = arith.constant 1 : index
    %c2_34 = arith.constant 2 : index
    %c0_35 = arith.constant 0 : index
    %53 = vector.load %arg10[%c1_33, %c2_34, %c0_35] : memref<18x18x32xf32, #tpu.memory_space<vmem>>, vector<16x16x32xf32>
    %54 = vector.extract_strided_slice %16 {offsets = [1, 2, 0], sizes = [1, 1, 32], strides = [1, 1, 1]} : vector<3x3x32xf32> to vector<1x1x32xf32>
    %55 = vector.shape_cast %54 : vector<1x1x32xf32> to vector<32xf32>
    %56 = vector.shape_cast %55 : vector<32xf32> to vector<1x1x32xf32>
    %57 = vector.broadcast %56 : vector<1x1x32xf32> to vector<16x16x32xf32>
    %58 = arith.mulf %53, %57 : vector<16x16x32xf32>
    %59 = arith.addf %52, %58 : vector<16x16x32xf32>
    %c2_36 = arith.constant 2 : index
    %c0_37 = arith.constant 0 : index
    %c0_38 = arith.constant 0 : index
    %60 = vector.load %arg10[%c2_36, %c0_37, %c0_38] : memref<18x18x32xf32, #tpu.memory_space<vmem>>, vector<16x16x32xf32>
    %61 = vector.extract_strided_slice %16 {offsets = [2, 0, 0], sizes = [1, 1, 32], strides = [1, 1, 1]} : vector<3x3x32xf32> to vector<1x1x32xf32>
    %62 = vector.shape_cast %61 : vector<1x1x32xf32> to vector<32xf32>
    %63 = vector.shape_cast %62 : vector<32xf32> to vector<1x1x32xf32>
    %64 = vector.broadcast %63 : vector<1x1x32xf32> to vector<16x16x32xf32>
    %65 = arith.mulf %60, %64 : vector<16x16x32xf32>
    %66 = arith.addf %59, %65 : vector<16x16x32xf32>
    %c2_39 = arith.constant 2 : index
    %c1_40 = arith.constant 1 : index
    %c0_41 = arith.constant 0 : index
    %67 = vector.load %arg10[%c2_39, %c1_40, %c0_41] : memref<18x18x32xf32, #tpu.memory_space<vmem>>, vector<16x16x32xf32>
    %68 = vector.extract_strided_slice %16 {offsets = [2, 1, 0], sizes = [1, 1, 32], strides = [1, 1, 1]} : vector<3x3x32xf32> to vector<1x1x32xf32>
    %69 = vector.shape_cast %68 : vector<1x1x32xf32> to vector<32xf32>
    %70 = vector.shape_cast %69 : vector<32xf32> to vector<1x1x32xf32>
    %71 = vector.broadcast %70 : vector<1x1x32xf32> to vector<16x16x32xf32>
    %72 = arith.mulf %67, %71 : vector<16x16x32xf32>
    %73 = arith.addf %66, %72 : vector<16x16x32xf32>
    %c2_42 = arith.constant 2 : index
    %c2_43 = arith.constant 2 : index
    %c0_44 = arith.constant 0 : index
    %74 = vector.load %arg10[%c2_42, %c2_43, %c0_44] : memref<18x18x32xf32, #tpu.memory_space<vmem>>, vector<16x16x32xf32>
    %75 = vector.extract_strided_slice %16 {offsets = [2, 2, 0], sizes = [1, 1, 32], strides = [1, 1, 1]} : vector<3x3x32xf32> to vector<1x1x32xf32>
    %76 = vector.shape_cast %75 : vector<1x1x32xf32> to vector<32xf32>
    %77 = vector.shape_cast %76 : vector<32xf32> to vector<1x1x32xf32>
    %78 = vector.broadcast %77 : vector<1x1x32xf32> to vector<16x16x32xf32>
    %79 = arith.mulf %74, %78 : vector<16x16x32xf32>
    %80 = arith.addf %73, %79 : vector<16x16x32xf32>
    %c0_45 = arith.constant 0 : index
    %c0_46 = arith.constant 0 : index
    %c0_47 = arith.constant 0 : index
    %81 = vector.load %arg5[%c0_45, %c0_46, %c0_47] : memref<1x1x32xf32, #tpu.memory_space<vmem>>, vector<1x1x32xf32>
    %82 = vector.broadcast %81 : vector<1x1x32xf32> to vector<16x16x32xf32>
    %83 = arith.addf %80, %82 : vector<16x16x32xf32>
    %cst_48 = arith.constant 0.000000e+00 : f32
    %84 = vector.broadcast %cst_48 : f32 to vector<16x16x32xf32>
    %85 = arith.maximumf %83, %84 : vector<16x16x32xf32>
    %cst_49 = arith.constant 6.000000e+00 : f32
    %86 = vector.broadcast %cst_49 : f32 to vector<16x16x32xf32>
    %87 = arith.minimumf %85, %86 : vector<16x16x32xf32>
    %88 = vector.shape_cast %87 : vector<16x16x32xf32> to vector<256x32xf32>
    %c0_50 = arith.constant 0 : index
    %c0_51 = arith.constant 0 : index
    %89 = vector.load %arg6[%c0_50, %c0_51] : memref<8x32xf32, #tpu.memory_space<vmem>>, vector<8x32xf32>
    %cst_52 = arith.constant dense<0.000000e+00> : vector<8x256xf32>
    %90 = tpu.matmul %89, %88, %cst_52 {dimension_numbers = #tpu.dot_dimension_numbers<[1], [1], [0], [0], [0, 0, 1, 0], [], []>} : vector<8x32xf32>, vector<256x32xf32>, vector<8x256xf32> -> vector<8x256xf32>
    %c0_53 = arith.constant 0 : index
    %c0_54 = arith.constant 0 : index
    %91 = vector.load %arg7[%c0_53, %c0_54] : memref<8x1xf32, #tpu.memory_space<vmem>>, vector<8x1xf32>
    %92 = vector.broadcast %91 : vector<8x1xf32> to vector<8x256xf32>
    %93 = arith.addf %90, %92 : vector<8x256xf32>
    %c0_55 = arith.constant 0 : index
    %c0_56 = arith.constant 0 : index
    %c0_57 = arith.constant 0 : index
    %94 = vector.load %arg8[%c0_55, %c0_56, %c0_57] : memref<1x8x256xf32, #tpu.memory_space<vmem>>, vector<1x8x256xf32>
    %95 = vector.shape_cast %94 : vector<1x8x256xf32> to vector<8x256xf32>
    %96 = arith.addf %93, %95 : vector<8x256xf32>
    %c0_58 = arith.constant 0 : index
    %c0_59 = arith.constant 0 : index
    %c0_60 = arith.constant 0 : index
    %97 = vector.load %arg9[%c0_58, %c0_59, %c0_60] : memref<1x8x256xf32, #tpu.memory_space<vmem>>, vector<1x8x256xf32>
    %98 = vector.shape_cast %97 : vector<1x8x256xf32> to vector<8x256xf32>
    %99 = vector.shape_cast %96 : vector<8x256xf32> to vector<1x8x256xf32>
    tpu.vector_store %arg9[%c0_58, %c0_59, %c0_60], %99 {strides = array<i32>} : memref<1x8x256xf32, #tpu.memory_space<vmem>>, vector<1x8x256xf32>,
    return
  }
  func.func @transform_0(%arg0: i32) -> (i32, i32, i32, i32) {
    %c0_i32 = arith.constant 0 : i32
    %c0_i32_0 = arith.constant 0 : i32
    %c0_i32_1 = arith.constant 0 : i32
    %c0_i32_2 = arith.constant 0 : i32
    return %arg0, %c0_i32, %c0_i32_0, %c0_i32_1 : i32, i32, i32, i32
  }
  func.func @transform_1(%arg0: i32) -> (i32, i32) {
    %c0_i32 = arith.constant 0 : i32
    %c0_i32_0 = arith.constant 0 : i32
    %c0_i32_1 = arith.constant 0 : i32
    return %c0_i32, %c0_i32_0 : i32, i32
  }
  func.func @transform_2(%arg0: i32) -> (i32, i32) {
    %c0_i32 = arith.constant 0 : i32
    %c0_i32_0 = arith.constant 0 : i32
    %c0_i32_1 = arith.constant 0 : i32
    return %c0_i32, %c0_i32_0 : i32, i32
  }
  func.func @transform_3(%arg0: i32) -> (i32, i32, i32) {
    %c0_i32 = arith.constant 0 : i32
    %c0_i32_0 = arith.constant 0 : i32
    %c0_i32_1 = arith.constant 0 : i32
    %c0_i32_2 = arith.constant 0 : i32
    return %c0_i32, %c0_i32_0, %c0_i32_1 : i32, i32, i32
  }
  func.func @transform_4(%arg0: i32) -> (i32, i32, i32) {
    %c0_i32 = arith.constant 0 : i32
    %c0_i32_0 = arith.constant 0 : i32
    %c0_i32_1 = arith.constant 0 : i32
    %c0_i32_2 = arith.constant 0 : i32
    return %c0_i32, %c0_i32_0, %c0_i32_1 : i32, i32, i32
  }
  func.func @transform_5(%arg0: i32) -> (i32, i32) {
    %c0_i32 = arith.constant 0 : i32
    %c0_i32_0 = arith.constant 0 : i32
    %c0_i32_1 = arith.constant 0 : i32
    return %c0_i32, %c0_i32_0 : i32, i32
  }
  func.func @transform_6(%arg0: i32) -> (i32, i32) {
    %c0_i32 = arith.constant 0 : i32
    %c0_i32_0 = arith.constant 0 : i32
    %c0_i32_1 = arith.constant 0 : i32
    return %c0_i32, %c0_i32_0 : i32, i32
  }
  func.func @transform_7(%arg0: i32) -> (i32, i32, i32) {
    %c0_i32 = arith.constant 0 : i32
    %c0_i32_0 = arith.constant 0 : i32
    %c0_i32_1 = arith.constant 0 : i32
    return %arg0, %c0_i32, %c0_i32_0 : i32, i32, i32
  }
  func.func @transform_8(%arg0: i32) -> (i32, i32, i32) {
    %c0_i32 = arith.constant 0 : i32
    %c0_i32_0 = arith.constant 0 : i32
    %c0_i32_1 = arith.constant 0 : i32
    return %arg0, %c0_i32, %c0_i32_0 : i32, i32, i32
  }
}

</mosaic_0001>

<llo_original>
// kernel: tpu_custom_call.1
$region0: #{tpu_custom_call.1}
  #allocation0 [shape = 'u32[]', space=smem, size = 0x4, offset = 0x4, fixed_abs, tag = 'smem constant byte address 0x4 - core index']
  #allocation1 [shape = 'u32[144,128]{1,0:T(1,128)}', space=vmem, size = 0x12000, scoped, tag = 'internal scratch']
  #allocation2 [shape = 'f32[18,18,32]{2,1,0:T(8,128)}', space=vmem, size = 0x36000, scoped, tag = 'scratch operand']
  %s0 = inlined_call_operand.vmem [shape: f32[2,16,16,8], index: 0, kind: input, shape index: {}]
  %s1 = inlined_call_operand.vmem [shape: f32[8,32], index: 1, kind: input, shape index: {}]
  %s2 = inlined_call_operand.vmem [shape: f32[1,32], index: 2, kind: input, shape index: {}]
  %s3 = inlined_call_operand.vmem [shape: f32[3,3,32], index: 3, kind: input, shape index: {}]
  %s4 = inlined_call_operand.vmem [shape: f32[1,1,32], index: 4, kind: input, shape index: {}]
  %s5 = inlined_call_operand.vmem [shape: f32[8,32], index: 5, kind: input, shape index: {}]
  %s6 = inlined_call_operand.vmem [shape: f32[8,1], index: 6, kind: input, shape index: {}]
  %s7 = inlined_call_operand.vmem [shape: f32[2,8,256], index: 7, kind: input, shape index: {}]
  %s8 = inlined_call_operand.hbm [shape: f32[2,8,256], index: 8, kind: output, shape index: {}]
  %s9 = sld [smem:[#allocation0]]
  $region65: #{tpu_custom_call.1} parent=0
    _
  %s11 = ssub.s32 1, %s9
  %s12 = scalar_select 0, %s11, %s9
  $region1: #{tpu_custom_call.1} parent=0
    #allocation3 [shape = 'u8[16384]{0}', space=vmem, size = 0x4000, scoped, tag = 'output window, operand 0']
    #allocation4 [shape = 's32[2]{0}', space=sflag, size = 0x8, scoped, tag = 'scoped memory for tpu_custom_call.1']
    %13 = vsyncpa [#allocation4], 0
    %s14 = scalar_lea.sflag [#allocation4], 1
    %15 = vsyncpa %s14, 0
    loop: start=0, step=1, limit=4
    $region2: #{tpu_custom_call.1} parent=1 // loop_pre_header
      _
    $region3: #{tpu_custom_call.1} parent=1 // loop_header
      %s17 = sphi 0, %s21
      %p18 = scmp.ge.s32.totalorder %s17, 4
      %s27 = sphi 0, %s29
      %s30 = sphi 0, %s27
      %s31 = sphi 0, %s30
      %s47 = sphi 0, %s31
      %s51 = sphi 0, %s51
      %s53 = sphi 0, %s51
      %s54 = sphi 0, %s53
      %s68 = sphi 0, %s54
      %s72 = sphi 0, %s72
      %s74 = sphi 0, %s72
      %s75 = sphi 0, %s74
      %s89 = sphi 0, %s75
      %s93 = sphi 0, %s93
      %s95 = sphi 0, %s93
      %s96 = sphi 0, %s95
      %s110 = sphi 0, %s96
      %s114 = sphi 0, %s114
      %s116 = sphi 0, %s114
      %s117 = sphi 0, %s116
      %s131 = sphi 0, %s117
      %s135 = sphi 0, %s135
      %s137 = sphi 0, %s135
      %s138 = sphi 0, %s137
      %s152 = sphi 0, %s138
      %s156 = sphi 0, %s156
      %s158 = sphi 0, %s156
      %s159 = sphi 0, %s158
      %s173 = sphi 0, %s159
      %s179 = sphi 0, %s181
      %s182 = sphi 0, %s179
      %s183 = sphi 0, %s182
      %s199 = sphi 0, %s183
      %s205 = sphi 0, %s207
      %s208 = sphi 0, %s205
      %s209 = sphi 0, %s208
      %s225 = sphi 0, %s209
    $region4: #{tpu_custom_call.1} parent=1 // loop_header_branch
      %20 = sbr.rel (%p18) target = $region8
    $region5: #{tpu_custom_call.1} parent=1 // loop_body
      %s22 = ssub.s32 %s17, 1
      %s23 = ssub.s32 %s17, 2
      %s24 = sadd.s32 %s17, 1
      %s25 = ssub.s32 %s17, %s24
      %p26 = scmp.eq.s32.totalorder %s25, 0
      %s28 = sadd.s32 %s27, 1
      %s29 = scalar_select %p26, %s27, %s28
      %p32 = pneg %p26
      %p33 = scmp.eq.s32.totalorder %s17, 1
      %p34 = por %p32, %p33
      %p35 = scmp.ne.s32.totalorder %s27, %s30
      %p36 = scmp.eq.s32.totalorder %s17, 0
      %p37 = por %p35, %p36
      %p38 = scmp.ne.s32.totalorder %s27, %s30
      %p39 = scmp.eq.s32.totalorder %s22, 1
      %p40 = por %p38, %p39
      %p41 = scmp.ne.s32.totalorder %s30, %s31
      %p42 = scmp.eq.s32.totalorder %s22, 0
      %p43 = por %p41, %p42
      %p44 = scmp.ne.s32.totalorder %s30, %s31
      %p45 = scmp.eq.s32.totalorder %s23, 1
      %p46 = por %p44, %p45
      %p48 = scmp.ne.s32.totalorder %s31, %s47
      %p49 = scmp.eq.s32.totalorder %s23, 0
      %p50 = por %p48, %p49
      %s52 = sadd.s32 %s51, 1
      %p55 = scmp.eq.s32.totalorder %s17, 1
      %p56 = scmp.ne.s32.totalorder %s51, %s53
      %p57 = scmp.eq.s32.totalorder %s17, 0
      %p58 = por %p56, %p57
      %p59 = scmp.ne.s32.totalorder %s51, %s53
      %p60 = scmp.eq.s32.totalorder %s22, 1
      %p61 = por %p59, %p60
      %p62 = scmp.ne.s32.totalorder %s53, %s54
      %p63 = scmp.eq.s32.totalorder %s22, 0
      %p64 = por %p62, %p63
      %p65 = scmp.ne.s32.totalorder %s53, %s54
      %p66 = scmp.eq.s32.totalorder %s23, 1
      %p67 = por %p65, %p66
      %p69 = scmp.ne.s32.totalorder %s54, %s68
      %p70 = scmp.eq.s32.totalorder %s23, 0
      %p71 = por %p69, %p70
      %s73 = sadd.s32 %s72, 1
      %p76 = scmp.eq.s32.totalorder %s17, 1
      %p77 = scmp.ne.s32.totalorder %s72, %s74
      %p78 = scmp.eq.s32.totalorder %s17, 0
      %p79 = por %p77, %p78
      %p80 = scmp.ne.s32.totalorder %s72, %s74
      %p81 = scmp.eq.s32.totalorder %s22, 1
      %p82 = por %p80, %p81
      %p83 = scmp.ne.s32.totalorder %s74, %s75
      %p84 = scmp.eq.s32.totalorder %s22, 0
      %p85 = por %p83, %p84
      %p86 = scmp.ne.s32.totalorder %s74, %s75
      %p87 = scmp.eq.s32.totalorder %s23, 1
      %p88 = por %p86, %p87
      %p90 = scmp.ne.s32.totalorder %s75, %s89
      %p91 = scmp.eq.s32.totalorder %s23, 0
      %p92 = por %p90, %p91
      %s94 = sadd.s32 %s93, 1
      %p97 = scmp.eq.s32.totalorder %s17, 1
      %p98 = scmp.ne.s32.totalorder %s93, %s95
      %p99 = scmp.eq.s32.totalorder %s17, 0
      %p100 = por %p98, %p99
      %p101 = scmp.ne.s32.totalorder %s93, %s95
      %p102 = scmp.eq.s32.totalorder %s22, 1
      %p103 = por %p101, %p102
      %p104 = scmp.ne.s32.totalorder %s95, %s96
      %p105 = scmp.eq.s32.totalorder %s22, 0
      %p106 = por %p104, %p105
      %p107 = scmp.ne.s32.totalorder %s95, %s96
      %p108 = scmp.eq.s32.totalorder %s23, 1
      %p109 = por %p107, %p108
      %p111 = scmp.ne.s32.totalorder %s96, %s110
      %p112 = scmp.eq.s32.totalorder %s23, 0
      %p113 = por %p111, %p112
      %s115 = sadd.s32 %s114, 1
      %p118 = scmp.eq.s32.totalorder %s17, 1
      %p119 = scmp.ne.s32.totalorder %s114, %s116
      %p120 = scmp.eq.s32.totalorder %s17, 0
      %p121 = por %p119, %p120
      %p122 = scmp.ne.s32.totalorder %s114, %s116
      %p123 = scmp.eq.s32.totalorder %s22, 1
      %p124 = por %p122, %p123
      %p125 = scmp.ne.s32.totalorder %s116, %s117
      %p126 = scmp.eq.s32.totalorder %s22, 0
      %p127 = por %p125, %p126
      %p128 = scmp.ne.s32.totalorder %s116, %s117
      %p129 = scmp.eq.s32.totalorder %s23, 1
      %p130 = por %p128, %p129
      %p132 = scmp.ne.s32.totalorder %s117, %s131
      %p133 = scmp.eq.s32.totalorder %s23, 0
      %p134 = por %p132, %p133
      %s136 = sadd.s32 %s135, 1
      %p139 = scmp.eq.s32.totalorder %s17, 1
      %p140 = scmp.ne.s32.totalorder %s135, %s137
      %p141 = scmp.eq.s32.totalorder %s17, 0
      %p142 = por %p140, %p141
      %p143 = scmp.ne.s32.totalorder %s135, %s137
      %p144 = scmp.eq.s32.totalorder %s22, 1
      %p145 = por %p143, %p144
      %p146 = scmp.ne.s32.totalorder %s137, %s138
      %p147 = scmp.eq.s32.totalorder %s22, 0
      %p148 = por %p146, %p147
      %p149 = scmp.ne.s32.totalorder %s137, %s138
      %p150 = scmp.eq.s32.totalorder %s23, 1
      %p151 = por %p149, %p150
      %p153 = scmp.ne.s32.totalorder %s138, %s152
      %p154 = scmp.eq.s32.totalorder %s23, 0
      %p155 = por %p153, %p154
      %s157 = sadd.s32 %s156, 1
      %p160 = scmp.eq.s32.totalorder %s17, 1
      %p161 = scmp.ne.s32.totalorder %s156, %s158
      %p162 = scmp.eq.s32.totalorder %s17, 0
      %p163 = por %p161, %p162
      %p164 = scmp.ne.s32.totalorder %s156, %s158
      %p165 = scmp.eq.s32.totalorder %s22, 1
      %p166 = por %p164, %p165
      %p167 = scmp.ne.s32.totalorder %s158, %s159
      %p168 = scmp.eq.s32.totalorder %s22, 0
      %p169 = por %p167, %p168
      %p170 = scmp.ne.s32.totalorder %s158, %s159
      %p171 = scmp.eq.s32.totalorder %s23, 1
      %p172 = por %p170, %p171
      %p174 = scmp.ne.s32.totalorder %s159, %s173
      %p175 = scmp.eq.s32.totalorder %s23, 0
      %p176 = por %p174, %p175
      %s177 = ssub.s32 %s17, %s24
      %p178 = scmp.eq.s32.totalorder %s177, 0
      %s180 = sadd.s32 %s179, 1
      %s181 = scalar_select %p178, %s179, %s180
      %p184 = pneg %p178
      %p185 = scmp.eq.s32.totalorder %s17, 1
      %p186 = por %p184, %p185
      %p187 = scmp.ne.s32.totalorder %s179, %s182
      %p188 = scmp.eq.s32.totalorder %s17, 0
      %p189 = por %p187, %p188
      %p190 = scmp.ne.s32.totalorder %s179, %s182
      %p191 = scmp.eq.s32.totalorder %s22, 1
      %p192 = por %p190, %p191
      %p193 = scmp.ne.s32.totalorder %s182, %s183
      %p194 = scmp.eq.s32.totalorder %s22, 0
      %p195 = por %p193, %p194
      %p196 = scmp.ne.s32.totalorder %s182, %s183
      %p197 = scmp.eq.s32.totalorder %s23, 1
      %p198 = por %p196, %p197
      %p200 = scmp.ne.s32.totalorder %s183, %s199
      %p201 = scmp.eq.s32.totalorder %s23, 0
      %p202 = por %p200, %p201
      %s203 = ssub.s32 %s17, %s24
      %p204 = scmp.eq.s32.totalorder %s203, 0
      %s206 = sadd.s32 %s205, 1
      %s207 = scalar_select %p204, %s205, %s206
      %p210 = pneg %p204
      %p211 = scmp.eq.s32.totalorder %s17, 1
      %p212 = por %p210, %p211
      %p213 = scmp.ne.s32.totalorder %s205, %s208
      %p214 = scmp.eq.s32.totalorder %s17, 0
      %p215 = por %p213, %p214
      %p216 = scmp.ne.s32.totalorder %s205, %s208
      %p217 = scmp.eq.s32.totalorder %s22, 1
      %p218 = por %p216, %p217
      %p219 = scmp.ne.s32.totalorder %s208, %s209
      %p220 = scmp.eq.s32.totalorder %s22, 0
      %p221 = por %p219, %p220
      %p222 = scmp.ne.s32.totalorder %s208, %s209
      %p223 = scmp.eq.s32.totalorder %s23, 1
      %p224 = por %p222, %p223
      %p226 = scmp.ne.s32.totalorder %s209, %s225
      %p227 = scmp.eq.s32.totalorder %s23, 0
      %p228 = por %p226, %p227
      %p229 = scmp.le.s32.totalorder 1, %s17
      %p230 = scmp.lt.s32.totalorder %s17, 3
      %p231 = pnand %p229, %p230
      %p232 = pneg %p231
      // Predicated region
      $region9: #{tpu_custom_call.1} parent=5 // pred_check
        _
      $region10: #{tpu_custom_call.1} parent=5 // pred_check_branch
        %234 = sbr.rel (%p231) target = $region12
      $region11: #{tpu_custom_call.1} parent=5 // pred_region
        %s235 = ssub.s32 %s17, 1
        // Predicated region
        $region13: #{tpu_custom_call.1} parent=11 // pred_check
          %p236 = pneg %p64
        $region14: #{tpu_custom_call.1} parent=11 // pred_check_branch
          %238 = sbr.rel (%p236) target = $region16
        $region15: #{tpu_custom_call.1} parent=11 // pred_region
          _
        $region16: #{tpu_custom_call.1} parent=11 // pred_fallthru
          _
        // Predicated region
        $region17: #{tpu_custom_call.1} parent=11 // pred_check
          %p239 = pneg %p85
        $region18: #{tpu_custom_call.1} parent=11 // pred_check_branch
          %241 = sbr.rel (%p239) target = $region20
        $region19: #{tpu_custom_call.1} parent=11 // pred_region
          _
        $region20: #{tpu_custom_call.1} parent=11 // pred_fallthru
          _
        // Predicated region
        $region21: #{tpu_custom_call.1} parent=11 // pred_check
          %p242 = pneg %p106
        $region22: #{tpu_custom_call.1} parent=11 // pred_check_branch
          %244 = sbr.rel (%p242) target = $region24
        $region23: #{tpu_custom_call.1} parent=11 // pred_region
          _
        $region24: #{tpu_custom_call.1} parent=11 // pred_fallthru
          _
        // Predicated region
        $region25: #{tpu_custom_call.1} parent=11 // pred_check
          %p245 = pneg %p127
        $region26: #{tpu_custom_call.1} parent=11 // pred_check_branch
          %247 = sbr.rel (%p245) target = $region28
        $region27: #{tpu_custom_call.1} parent=11 // pred_region
          _
        $region28: #{tpu_custom_call.1} parent=11 // pred_fallthru
          _
        // Predicated region
        $region29: #{tpu_custom_call.1} parent=11 // pred_check
          %p248 = pneg %p148
        $region30: #{tpu_custom_call.1} parent=11 // pred_check_branch
          %250 = sbr.rel (%p248) target = $region32
        $region31: #{tpu_custom_call.1} parent=11 // pred_region
          _
        $region32: #{tpu_custom_call.1} parent=11 // pred_fallthru
          _
        // Predicated region
        $region33: #{tpu_custom_call.1} parent=11 // pred_check
          %p251 = pneg %p169
        $region34: #{tpu_custom_call.1} parent=11 // pred_check_branch
          %253 = sbr.rel (%p251) target = $region36
        $region35: #{tpu_custom_call.1} parent=11 // pred_region
          _
        $region36: #{tpu_custom_call.1} parent=11 // pred_fallthru
          _
      $region12: #{tpu_custom_call.1} parent=5 // pred_fallthru
        _
      %p254 = scmp.lt.s32.totalorder %s17, 2
      // Predicated region
      $region37: #{tpu_custom_call.1} parent=5 // pred_check
        %p255 = pneg %p254
      $region38: #{tpu_custom_call.1} parent=5 // pred_check_branch
        %257 = sbr.rel (%p255) target = $region40
      $region39: #{tpu_custom_call.1} parent=5 // pred_region
        // Predicated region
        $region41: #{tpu_custom_call.1} parent=39 // pred_check
          %p258 = pneg %p37
        $region42: #{tpu_custom_call.1} parent=39 // pred_check_branch
          %260 = sbr.rel (%p258) target = $region44
        $region43: #{tpu_custom_call.1} parent=39 // pred_region
          %p261 = scmp.lt.s32.totalorder %s17, 1
          %s262 = scalar_select %p261, %s17, 1
          %s263 = smul.addr %s262, 32
          %s264 = smul.addr %s263, 8
          %s265 = scalar_lea.vmem %s0, %s264
        $region44: #{tpu_custom_call.1} parent=39 // pred_fallthru
          _
        // Predicated region
        $region45: #{tpu_custom_call.1} parent=39 // pred_check
          %p266 = pneg %p189
        $region46: #{tpu_custom_call.1} parent=39 // pred_check_branch
          %268 = sbr.rel (%p266) target = $region48
        $region47: #{tpu_custom_call.1} parent=39 // pred_region
          %p269 = scmp.lt.s32.totalorder %s17, 1
          %s270 = scalar_select %p269, %s17, 1
          %s271 = smul.addr %s270, 2
          %s272 = smul.addr %s271, 8
          %s273 = scalar_lea.vmem %s7, %s272
        $region48: #{tpu_custom_call.1} parent=39 // pred_fallthru
          _
      $region40: #{tpu_custom_call.1} parent=5 // pred_fallthru
        _
      %p274 = scmp.le.s32.totalorder 1, %s17
      %p275 = scmp.lt.s32.totalorder %s17, 3
      %p276 = pnand %p274, %p275
      %p277 = pneg %p276
      // Predicated region
      $region49: #{tpu_custom_call.1} parent=5 // pred_check
        _
      $region50: #{tpu_custom_call.1} parent=5 // pred_check_branch
        %279 = sbr.rel (%p276) target = $region52
      $region51: #{tpu_custom_call.1} parent=5 // pred_region
        %s280 = ssub.s32 %s17, 1
        %p281 = scmp.lt.s32.totalorder %s22, 1
        %s282 = scalar_select %p281, %s22, 1
        %s283 = smul.addr %s282, 32
        %s284 = smul.addr %s283, 8
        %s285 = scalar_lea.vmem %s0, %s284
        %p286 = pneg %p43
        %p287 = pneg %p40
        %p288 = pneg %p64
        %p289 = pneg %p61
        %p290 = pneg %p85
        %p291 = pneg %p82
        %p292 = pneg %p106
        %p293 = pneg %p103
        %p294 = pneg %p127
        %p295 = pneg %p124
        %p296 = pneg %p148
        %p297 = pneg %p145
        %p298 = pneg %p169
        %p299 = pneg %p166
        %p300 = scmp.lt.s32.totalorder %s22, 1
        %s301 = scalar_select %p300, %s22, 1
        %s302 = smul.addr %s301, 2
        %s303 = smul.addr %s302, 8
        %s304 = scalar_lea.vmem %s7, %s303
        %p305 = pneg %p195
        %p306 = pneg %p192
        %p307 = pneg %p221
        %p308 = pneg %p218
        %s309 = sand.u32 %s208, 1
        %s310 = scalar_lea.sflag [#allocation4], %s309
        %s311 = sand.u32 %s208, 1
        %s312 = smul.addr %s311, 16
        %s313 = scalar_lea.vmem [#allocation3], %s312
        %p314 = scmp.lt.s32.totalorder %s22, 1
        %s315 = scalar_select %p314, %s22, 1
        %s316 = smul.addr %s315, 32
        %s317 = smul.addr %s316, 8
        %s318 = scalar_lea.vmem %s0, %s317
        %p319 = scmp.lt.s32.totalorder %s22, 1
        %s320 = scalar_select %p319, %s22, 1
        %s321 = smul.addr %s320, 2
        %s322 = smul.addr %s321, 8
        %s323 = scalar_lea.vmem %s7, %s322
        %vm324 = vcmask 261120
        %325 = vst.msk [vmem:[#allocation2] sm:$0xff] %vm324, 0.0
        %326 = vst.msk [vmem:[#allocation2 + $0x8] sm:$0xff] %vm324, 0.0
        %vm327 = vcmask 254976
        %328 = vst.msk [vmem:[#allocation2 + $0x10] sm:$0x3] %vm327, 0.0
        %329 = vst.msk [vmem:[#allocation2 + $0x18] sm:$0xff] %vm324, 0.0
        %330 = vst.msk [vmem:[#allocation2 + $0x20] sm:$0xff] %vm324, 0.0
        %331 = vst.msk [vmem:[#allocation2 + $0x28] sm:$0x3] %vm327, 0.0
        %332 = vst.msk [vmem:[#allocation2 + $0x30] sm:$0xff] %vm324, 0.0
        %333 = vst.msk [vmem:[#allocation2 + $0x38] sm:$0xff] %vm324, 0.0
        %334 = vst.msk [vmem:[#allocation2 + $0x40] sm:$0x3] %vm327, 0.0
        %335 = vst.msk [vmem:[#allocation2 + $0x48] sm:$0xff] %vm324, 0.0
        %336 = vst.msk [vmem:[#allocation2 + $0x50] sm:$0xff] %vm324, 0.0
        %337 = vst.msk [vmem:[#allocation2 + $0x58] sm:$0x3] %vm327, 0.0
        %338 = vst.msk [vmem:[#allocation2 + $0x60] sm:$0xff] %vm324, 0.0
        %339 = vst.msk [vmem:[#allocation2 + $0x68] sm:$0xff] %vm324, 0.0
        %340 = vst.msk [vmem:[#allocation2 + $0x70] sm:$0x3] %vm327, 0.0
        %341 = vst.msk [vmem:[#allocation2 + $0x78] sm:$0xff] %vm324, 0.0
        %342 = vst.msk [vmem:[#allocation2 + $0x80] sm:$0xff] %vm324, 0.0
        %343 = vst.msk [vmem:[#allocation2 + $0x88] sm:$0x3] %vm327, 0.0
        %344 = vst.msk [vmem:[#allocation2 + $0x90] sm:$0xff] %vm324, 0.0
        %345 = vst.msk [vmem:[#allocation2 + $0x98] sm:$0xff] %vm324, 0.0
        %346 = vst.msk [vmem:[#allocation2 + $0xa0] sm:$0x3] %vm327, 0.0
        %347 = vst.msk [vmem:[#allocation2 + $0xa8] sm:$0xff] %vm324, 0.0
        %348 = vst.msk [vmem:[#allocation2 + $0xb0] sm:$0xff] %vm324, 0.0
        %349 = vst.msk [vmem:[#allocation2 + $0xb8] sm:$0x3] %vm327, 0.0
        %350 = vst.msk [vmem:[#allocation2 + $0xc0] sm:$0xff] %vm324, 0.0
        %351 = vst.msk [vmem:[#allocation2 + $0xc8] sm:$0xff] %vm324, 0.0
        %352 = vst.msk [vmem:[#allocation2 + $0xd0] sm:$0x3] %vm327, 0.0
        %353 = vst.msk [vmem:[#allocation2 + $0xd8] sm:$0xff] %vm324, 0.0
        %354 = vst.msk [vmem:[#allocation2 + $0xe0] sm:$0xff] %vm324, 0.0
        %355 = vst.msk [vmem:[#allocation2 + $0xe8] sm:$0x3] %vm327, 0.0
        %356 = vst.msk [vmem:[#allocation2 + $0xf0] sm:$0xff] %vm324, 0.0
        %357 = vst.msk [vmem:[#allocation2 + $0xf8] sm:$0xff] %vm324, 0.0
        %358 = vst.msk [vmem:[#allocation2 + $0x100] sm:$0x3] %vm327, 0.0
        %359 = vst.msk [vmem:[#allocation2 + $0x108] sm:$0xff] %vm324, 0.0
        %360 = vst.msk [vmem:[#allocation2 + $0x110] sm:$0xff] %vm324, 0.0
        %361 = vst.msk [vmem:[#allocation2 + $0x118] sm:$0x3] %vm327, 0.0
        %362 = vst.msk [vmem:[#allocation2 + $0x120] sm:$0xff] %vm324, 0.0
        %363 = vst.msk [vmem:[#allocation2 + $0x128] sm:$0xff] %vm324, 0.0
        %364 = vst.msk [vmem:[#allocation2 + $0x130] sm:$0x3] %vm327, 0.0
        %365 = vst.msk [vmem:[#allocation2 + $0x138] sm:$0xff] %vm324, 0.0
        %366 = vst.msk [vmem:[#allocation2 + $0x140] sm:$0xff] %vm324, 0.0
        %367 = vst.msk [vmem:[#allocation2 + $0x148] sm:$0x3] %vm327, 0.0
        %368 = vst.msk [vmem:[#allocation2 + $0x150] sm:$0xff] %vm324, 0.0
        %369 = vst.msk [vmem:[#allocation2 + $0x158] sm:$0xff] %vm324, 0.0
        %370 = vst.msk [vmem:[#allocation2 + $0x160] sm:$0x3] %vm327, 0.0
        %371 = vst.msk [vmem:[#allocation2 + $0x168] sm:$0xff] %vm324, 0.0
        %372 = vst.msk [vmem:[#allocation2 + $0x170] sm:$0xff] %vm324, 0.0
        %373 = vst.msk [vmem:[#allocation2 + $0x178] sm:$0x3] %vm327, 0.0
        %374 = vst.msk [vmem:[#allocation2 + $0x180] sm:$0xff] %vm324, 0.0
        %375 = vst.msk [vmem:[#allocation2 + $0x188] sm:$0xff] %vm324, 0.0
        %376 = vst.msk [vmem:[#allocation2 + $0x190] sm:$0x3] %vm327, 0.0
        %377 = vst.msk [vmem:[#allocation2 + $0x198] sm:$0xff] %vm324, 0.0
        %378 = vst.msk [vmem:[#allocation2 + $0x1a0] sm:$0xff] %vm324, 0.0
        %379 = vst.msk [vmem:[#allocation2 + $0x1a8] sm:$0x3] %vm327, 0.0
        %v380 = vld [vmem:[%s318] sm:$0xff]
        %v381 = vld [vmem:[%s318 + $0x8] sm:$0xff]
        %v382 = vld [vmem:[%s318 + $0x10] sm:$0xff]
        %v383 = vld [vmem:[%s318 + $0x18] sm:$0xff]
        %v384 = vld [vmem:[%s318 + $0x20] sm:$0xff]
        %v385 = vld [vmem:[%s318 + $0x28] sm:$0xff]
        %v386 = vld [vmem:[%s318 + $0x30] sm:$0xff]
        %v387 = vld [vmem:[%s318 + $0x38] sm:$0xff]
        %v388 = vld [vmem:[%s318 + $0x40] sm:$0xff]
        %v389 = vld [vmem:[%s318 + $0x48] sm:$0xff]
        %v390 = vld [vmem:[%s318 + $0x50] sm:$0xff]
        %v391 = vld [vmem:[%s318 + $0x58] sm:$0xff]
        %v392 = vld [vmem:[%s318 + $0x60] sm:$0xff]
        %v393 = vld [vmem:[%s318 + $0x68] sm:$0xff]
        %v394 = vld [vmem:[%s318 + $0x70] sm:$0xff]
        %v395 = vld [vmem:[%s318 + $0x78] sm:$0xff]
        %v396 = vld [vmem:[%s318 + $0x80] sm:$0xff]
        %v397 = vld [vmem:[%s318 + $0x88] sm:$0xff]
        %v398 = vld [vmem:[%s318 + $0x90] sm:$0xff]
        %v399 = vld [vmem:[%s318 + $0x98] sm:$0xff]
        %v400 = vld [vmem:[%s318 + $0xa0] sm:$0xff]
        %v401 = vld [vmem:[%s318 + $0xa8] sm:$0xff]
        %v402 = vld [vmem:[%s318 + $0xb0] sm:$0xff]
        %v403 = vld [vmem:[%s318 + $0xb8] sm:$0xff]
        %v404 = vld [vmem:[%s318 + $0xc0] sm:$0xff]
        %v405 = vld [vmem:[%s318 + $0xc8] sm:$0xff]
        %v406 = vld [vmem:[%s318 + $0xd0] sm:$0xff]
        %v407 = vld [vmem:[%s318 + $0xd8] sm:$0xff]
        %v408 = vld [vmem:[%s318 + $0xe0] sm:$0xff]
        %v409 = vld [vmem:[%s318 + $0xe8] sm:$0xff]
        %v410 = vld [vmem:[%s318 + $0xf0] sm:$0xff]
        %v411 = vld [vmem:[%s318 + $0xf8] sm:$0xff]
        %v412 = vld [vmem:[%s1] sm:$0xff]
        %v413 = vld [vmem:[%s2] sm:$0x1]
        %v415 = vlaneseq
        %v416 = vshrl.u32 %v415, 7
        %v417 = vsub.s32 0, %v416
        %v418 = vrot.slane %v413, %v417
        %vm420 = vcmask 64512
        %v422 = vsel %vm420, %v380, 0
        %v425 = vsel %vm420, %v381, 0
        %v428 = vsel %vm420, %v382, 0
        %v431 = vsel %vm420, %v383, 0
        %v434 = vsel %vm420, %v384, 0
        %v437 = vsel %vm420, %v385, 0
        %v440 = vsel %vm420, %v386, 0
        %v443 = vsel %vm420, %v387, 0
        %v446 = vsel %vm420, %v388, 0
        %v449 = vsel %vm420, %v389, 0
        %v452 = vsel %vm420, %v390, 0
        %v455 = vsel %vm420, %v391, 0
        %v458 = vsel %vm420, %v392, 0
        %v461 = vsel %vm420, %v393, 0
        %v464 = vsel %vm420, %v394, 0
        %v467 = vsel %vm420, %v395, 0
        %v470 = vsel %vm420, %v396, 0
        %v473 = vsel %vm420, %v397, 0
        %v476 = vsel %vm420, %v398, 0
        %v479 = vsel %vm420, %v399, 0
        %v482 = vsel %vm420, %v400, 0
        %v485 = vsel %vm420, %v401, 0
        %v488 = vsel %vm420, %v402, 0
        %v491 = vsel %vm420, %v403, 0
        %v494 = vsel %vm420, %v404, 0
        %v497 = vsel %vm420, %v405, 0
        %v500 = vsel %vm420, %v406, 0
        %v503 = vsel %vm420, %v407, 0
        %v506 = vsel %vm420, %v408, 0
        %v509 = vsel %vm420, %v409, 0
        %v512 = vsel %vm420, %v410, 0
        %v515 = vsel %vm420, %v411, 0
        %517 = vmatprep.subr.mxu0 0.0
        %518 = vmatpush1.msra.mxu0 0.0
        %519 = vmatprep.subr.mxu0 0.0
        %520 = vmatpush1.msra.mxu0 0.0
        %521 = vmatprep.subr.mxu0 0.0
        %522 = vmatpush1.msra.mxu0 0.0
        %523 = vmatprep.subr.mxu0 0.0
        %524 = vmatpush1.msra.mxu0 0.0
        %525 = vmatprep.subr.mxu0 0.0
        %526 = vmatpush1.msra.mxu0 0.0
        %527 = vmatprep.subr.mxu0 0.0
        %528 = vmatpush1.msra.mxu0 0.0
        %529 = vmatprep.subr.mxu0 0.0
        %530 = vmatpush1.msra.mxu0 0.0
        %531 = vmatprep.subr.mxu0 0.0
        %532 = vmatpush1.msra.mxu0 0.0
        %533 = vmatprep.subr.mxu0 0.0
        %534 = vmatpush1.msra.mxu0 0.0
        %535 = vmatprep.subr.mxu0 0.0
        %536 = vmatpush1.msra.mxu0 0.0
        %537 = vmatprep.subr.mxu0 0.0
        %538 = vmatpush1.msra.mxu0 0.0
        %539 = vmatprep.subr.mxu0 0.0
        %540 = vmatpush1.msra.mxu0 0.0
        %541 = vmatprep.subr.mxu0 0.0
        %542 = vmatpush1.msra.mxu0 0.0
        %543 = vmatprep.subr.mxu0 0.0
        %544 = vmatpush1.msra.mxu0 0.0
        %545 = vmatprep.subr.mxu0 0.0
        %546 = vmatpush1.msra.mxu0 0.0
        %547 = vmatprep.subr.mxu0 0.0
        %548 = vmatpush1.msra.mxu0 %v412
        %549 = vmatprep.subr.mxu0 0.0
        %550 = vmatpush2.msra.mxu0 0.0
        %551 = vmatprep.subr.mxu0 0.0
        %552 = vmatpush2.msra.mxu0 0.0
        %553 = vmatprep.subr.mxu0 0.0
        %554 = vmatpush2.msra.mxu0 0.0
        %555 = vmatprep.subr.mxu0 0.0
        %556 = vmatpush2.msra.mxu0 0.0
        %557 = vmatprep.subr.mxu0 0.0
        %558 = vmatpush2.msra.mxu0 0.0
        %559 = vmatprep.subr.mxu0 0.0
        %560 = vmatpush2.msra.mxu0 0.0
        %561 = vmatprep.subr.mxu0 0.0
        %562 = vmatpush2.msra.mxu0 0.0
        %563 = vmatprep.subr.mxu0 0.0
        %564 = vmatpush2.msra.mxu0 0.0
        %565 = vmatprep.subr.mxu0 0.0
        %566 = vmatpush2.msra.mxu0 0.0
        %567 = vmatprep.subr.mxu0 0.0
        %568 = vmatpush2.msra.mxu0 0.0
        %569 = vmatprep.subr.mxu0 0.0
        %570 = vmatpush2.msra.mxu0 0.0
        %571 = vmatprep.subr.mxu0 0.0
        %572 = vmatpush2.msra.mxu0 0.0
        %573 = vmatprep.subr.mxu0 0.0
        %574 = vmatpush2.msra.mxu0 0.0
        %575 = vmatprep.subr.mxu0 0.0
        %576 = vmatpush2.msra.mxu0 0.0
        %577 = vmatprep.subr.mxu0 0.0
        %578 = vmatpush2.msra.mxu0 0.0
        %579 = vmatprep.subr.mxu0 0.0
        %580 = vmatpush2.msra.mxu0 0.0
        %581 = vmatprep.mubr.f32.mxu0 0.0
        %582 = vmatmul.mubr.f32.gmra.mxu0 %v422
        %v583 = vpop.f32.mrf.mxu0
        %v584 = vadd.f32 %v418, %v583
        %v585 = vpop.f32.mrf.mxu0
        %586 = vmatprep.mubr.f32.mxu0 0.0
        %587 = vmatmul.mubr.f32.gmra.mxu0 %v425
        %v588 = vpop.f32.mrf.mxu0
        %v589 = vadd.f32 %v418, %v588
        %v590 = vpop.f32.mrf.mxu0
        %591 = vmatprep.mubr.f32.mxu0 0.0
        %592 = vmatmul.mubr.f32.gmra.mxu0 %v428
        %v593 = vpop.f32.mrf.mxu0
        %v594 = vadd.f32 %v418, %v593
        %v595 = vpop.f32.mrf.mxu0
        %596 = vmatprep.mubr.f32.mxu0 0.0
        %597 = vmatmul.mubr.f32.gmra.mxu0 %v431
        %v598 = vpop.f32.mrf.mxu0
        %v599 = vadd.f32 %v418, %v598
        %v600 = vpop.f32.mrf.mxu0
        %601 = vmatprep.mubr.f32.mxu0 0.0
        %602 = vmatmul.mubr.f32.gmra.mxu0 %v434
        %v603 = vpop.f32.mrf.mxu0
        %v604 = vadd.f32 %v418, %v603
        %v605 = vpop.f32.mrf.mxu0
        %606 = vmatprep.mubr.f32.mxu0 0.0
        %607 = vmatmul.mubr.f32.gmra.mxu0 %v437
        %v608 = vpop.f32.mrf.mxu0
        %v609 = vadd.f32 %v418, %v608
        %v610 = vpop.f32.mrf.mxu0
        %611 = vmatprep.mubr.f32.mxu0 0.0
        %612 = vmatmul.mubr.f32.gmra.mxu0 %v440
        %v613 = vpop.f32.mrf.mxu0
        %v614 = vadd.f32 %v418, %v613
        %v615 = vpop.f32.mrf.mxu0
        %616 = vmatprep.mubr.f32.mxu0 0.0
        %617 = vmatmul.mubr.f32.gmra.mxu0 %v443
        %v618 = vpop.f32.mrf.mxu0
        %v619 = vadd.f32 %v418, %v618
        %v620 = vpop.f32.mrf.mxu0
        %621 = vmatprep.mubr.f32.mxu0 0.0
        %622 = vmatmul.mubr.f32.gmra.mxu0 %v446
        %v623 = vpop.f32.mrf.mxu0
        %v624 = vadd.f32 %v418, %v623
        %v625 = vpop.f32.mrf.mxu0
        %626 = vmatprep.mubr.f32.mxu0 0.0
        %627 = vmatmul.mubr.f32.gmra.mxu0 %v449
        %v628 = vpop.f32.mrf.mxu0
        %v629 = vadd.f32 %v418, %v628
        %v630 = vpop.f32.mrf.mxu0
        %631 = vmatprep.mubr.f32.mxu0 0.0
        %632 = vmatmul.mubr.f32.gmra.mxu0 %v452
        %v633 = vpop.f32.mrf.mxu0
        %v634 = vadd.f32 %v418, %v633
        %v635 = vpop.f32.mrf.mxu0
        %636 = vmatprep.mubr.f32.mxu0 0.0
        %637 = vmatmul.mubr.f32.gmra.mxu0 %v455
        %v638 = vpop.f32.mrf.mxu0
        %v639 = vadd.f32 %v418, %v638
        %v640 = vpop.f32.mrf.mxu0
        %641 = vmatprep.mubr.f32.mxu0 0.0
        %642 = vmatmul.mubr.f32.gmra.mxu0 %v458
        %v643 = vpop.f32.mrf.mxu0
        %v644 = vadd.f32 %v418, %v643
        %v645 = vpop.f32.mrf.mxu0
        %646 = vmatprep.mubr.f32.mxu0 0.0
        %647 = vmatmul.mubr.f32.gmra.mxu0 %v461
        %v648 = vpop.f32.mrf.mxu0
        %v649 = vadd.f32 %v418, %v648
        %v650 = vpop.f32.mrf.mxu0
        %651 = vmatprep.mubr.f32.mxu0 0.0
        %652 = vmatmul.mubr.f32.gmra.mxu0 %v464
        %v653 = vpop.f32.mrf.mxu0
        %v654 = vadd.f32 %v418, %v653
        %v655 = vpop.f32.mrf.mxu0
        %656 = vmatprep.mubr.f32.mxu0 0.0
        %657 = vmatmul.mubr.f32.gmra.mxu0 %v467
        %v658 = vpop.f32.mrf.mxu0
        %v659 = vadd.f32 %v418, %v658
        %v660 = vpop.f32.mrf.mxu0
        %661 = vmatprep.mubr.f32.mxu0 0.0
        %662 = vmatmul.mubr.f32.gmra.mxu0 %v470
        %v663 = vpop.f32.mrf.mxu0
        %v664 = vadd.f32 %v418, %v663
        %v665 = vpop.f32.mrf.mxu0
        %666 = vmatprep.mubr.f32.mxu0 0.0
        %667 = vmatmul.mubr.f32.gmra.mxu0 %v473
        %v668 = vpop.f32.mrf.mxu0
        %v669 = vadd.f32 %v418, %v668
        %v670 = vpop.f32.mrf.mxu0
        %671 = vmatprep.mubr.f32.mxu0 0.0
        %672 = vmatmul.mubr.f32.gmra.mxu0 %v476
        %v673 = vpop.f32.mrf.mxu0
        %v674 = vadd.f32 %v418, %v673
        %v675 = vpop.f32.mrf.mxu0
        %676 = vmatprep.mubr.f32.mxu0 0.0
        %677 = vmatmul.mubr.f32.gmra.mxu0 %v479
        %v678 = vpop.f32.mrf.mxu0
        %v679 = vadd.f32 %v418, %v678
        %v680 = vpop.f32.mrf.mxu0
        %681 = vmatprep.mubr.f32.mxu0 0.0
        %682 = vmatmul.mubr.f32.gmra.mxu0 %v482
        %v683 = vpop.f32.mrf.mxu0
        %v684 = vadd.f32 %v418, %v683
        %v685 = vpop.f32.mrf.mxu0
        %686 = vmatprep.mubr.f32.mxu0 0.0
        %687 = vmatmul.mubr.f32.gmra.mxu0 %v485
        %v688 = vpop.f32.mrf.mxu0
        %v689 = vadd.f32 %v418, %v688
        %v690 = vpop.f32.mrf.mxu0
        %691 = vmatprep.mubr.f32.mxu0 0.0
        %692 = vmatmul.mubr.f32.gmra.mxu0 %v488
        %v693 = vpop.f32.mrf.mxu0
        %v694 = vadd.f32 %v418, %v693
        %v695 = vpop.f32.mrf.mxu0
        %696 = vmatprep.mubr.f32.mxu0 0.0
        %697 = vmatmul.mubr.f32.gmra.mxu0 %v491
        %v698 = vpop.f32.mrf.mxu0
        %v699 = vadd.f32 %v418, %v698
        %v700 = vpop.f32.mrf.mxu0
        %701 = vmatprep.mubr.f32.mxu0 0.0
        %702 = vmatmul.mubr.f32.gmra.mxu0 %v494
        %v703 = vpop.f32.mrf.mxu0
        %v704 = vadd.f32 %v418, %v703
        %v705 = vpop.f32.mrf.mxu0
        %706 = vmatprep.mubr.f32.mxu0 0.0
        %707 = vmatmul.mubr.f32.gmra.mxu0 %v497
        %v708 = vpop.f32.mrf.mxu0
        %v709 = vadd.f32 %v418, %v708
        %v710 = vpop.f32.mrf.mxu0
        %711 = vmatprep.mubr.f32.mxu0 0.0
        %712 = vmatmul.mubr.f32.gmra.mxu0 %v500
        %v713 = vpop.f32.mrf.mxu0
        %v714 = vadd.f32 %v418, %v713
        %v715 = vpop.f32.mrf.mxu0
        %716 = vmatprep.mubr.f32.mxu0 0.0
        %717 = vmatmul.mubr.f32.gmra.mxu0 %v503
        %v718 = vpop.f32.mrf.mxu0
        %v719 = vadd.f32 %v418, %v718
        %v720 = vpop.f32.mrf.mxu0
        %721 = vmatprep.mubr.f32.mxu0 0.0
        %722 = vmatmul.mubr.f32.gmra.mxu0 %v506
        %v723 = vpop.f32.mrf.mxu0
        %v724 = vadd.f32 %v418, %v723
        %v725 = vpop.f32.mrf.mxu0
        %726 = vmatprep.mubr.f32.mxu0 0.0
        %727 = vmatmul.mubr.f32.gmra.mxu0 %v509
        %v728 = vpop.f32.mrf.mxu0
        %v729 = vadd.f32 %v418, %v728
        %v730 = vpop.f32.mrf.mxu0
        %731 = vmatprep.mubr.f32.mxu0 0.0
        %732 = vmatmul.mubr.f32.gmra.mxu0 %v512
        %v733 = vpop.f32.mrf.mxu0
        %v734 = vadd.f32 %v418, %v733
        %v735 = vpop.f32.mrf.mxu0
        %736 = vmatprep.mubr.f32.mxu0 0.0
        %737 = vmatmul.mubr.f32.gmra.mxu0 %v515
        %v738 = vpop.f32.mrf.mxu0
        %v739 = vadd.f32 %v418, %v738
        %v740 = vpop.f32.mrf.mxu0
        %741 = vdwg.mxu0
        %v742 = vmax.f32 %v584, 0.0
        %v743 = vmax.f32 %v589, 0.0
        %v744 = vmax.f32 %v594, 0.0
        %v745 = vmax.f32 %v599, 0.0
        %v746 = vmax.f32 %v604, 0.0
        %v747 = vmax.f32 %v609, 0.0
        %v748 = vmax.f32 %v614, 0.0
        %v749 = vmax.f32 %v619, 0.0
        %v750 = vmax.f32 %v624, 0.0
        %v751 = vmax.f32 %v629, 0.0
        %v752 = vmax.f32 %v634, 0.0
        %v753 = vmax.f32 %v639, 0.0
        %v754 = vmax.f32 %v644, 0.0
        %v755 = vmax.f32 %v649, 0.0
        %v756 = vmax.f32 %v654, 0.0
        %v757 = vmax.f32 %v659, 0.0
        %v758 = vmax.f32 %v664, 0.0
        %v759 = vmax.f32 %v669, 0.0
        %v760 = vmax.f32 %v674, 0.0
        %v761 = vmax.f32 %v679, 0.0
        %v762 = vmax.f32 %v684, 0.0
        %v763 = vmax.f32 %v689, 0.0
        %v764 = vmax.f32 %v694, 0.0
        %v765 = vmax.f32 %v699, 0.0
        %v766 = vmax.f32 %v704, 0.0
        %v767 = vmax.f32 %v709, 0.0
        %v768 = vmax.f32 %v714, 0.0
        %v769 = vmax.f32 %v719, 0.0
        %v770 = vmax.f32 %v724, 0.0
        %v771 = vmax.f32 %v729, 0.0
        %v772 = vmax.f32 %v734, 0.0
        %v773 = vmax.f32 %v739, 0.0
        %v774 = vmin.f32 %v742, 6.0
        %v775 = vmin.f32 %v743, 6.0
        %v776 = vmin.f32 %v744, 6.0
        %v777 = vmin.f32 %v745, 6.0
        %v778 = vmin.f32 %v746, 6.0
        %v779 = vmin.f32 %v747, 6.0
        %v780 = vmin.f32 %v748, 6.0
        %v781 = vmin.f32 %v749, 6.0
        %v782 = vmin.f32 %v750, 6.0
        %v783 = vmin.f32 %v751, 6.0
        %v784 = vmin.f32 %v752, 6.0
        %v785 = vmin.f32 %v753, 6.0
        %v786 = vmin.f32 %v754, 6.0
        %v787 = vmin.f32 %v755, 6.0
        %v788 = vmin.f32 %v756, 6.0
        %v789 = vmin.f32 %v757, 6.0
        %v790 = vmin.f32 %v758, 6.0
        %v791 = vmin.f32 %v759, 6.0
        %v792 = vmin.f32 %v760, 6.0
        %v793 = vmin.f32 %v761, 6.0
        %v794 = vmin.f32 %v762, 6.0
        %v795 = vmin.f32 %v763, 6.0
        %v796 = vmin.f32 %v764, 6.0
        %v797 = vmin.f32 %v765, 6.0
        %v798 = vmin.f32 %v766, 6.0
        %v799 = vmin.f32 %v767, 6.0
        %v800 = vmin.f32 %v768, 6.0
        %v801 = vmin.f32 %v769, 6.0
        %v802 = vmin.f32 %v770, 6.0
        %v803 = vmin.f32 %v771, 6.0
        %v804 = vmin.f32 %v772, 6.0
        %v805 = vmin.f32 %v773, 6.0
        %s806 = scalar_lea.vmem [#allocation2], 24
        %807 = vst.msk [vmem:[%s806 + $0x1] sm:$0xff] %vm324, %v774
        %808 = vst.msk [vmem:[%s806 + $0x9] sm:$0xff] %vm324, %v775
        %809 = vst.msk [vmem:[%s806 + $0x19] sm:$0xff] %vm324, %v776
        %810 = vst.msk [vmem:[%s806 + $0x21] sm:$0xff] %vm324, %v777
        %811 = vst.msk [vmem:[%s806 + $0x31] sm:$0xff] %vm324, %v778
        %812 = vst.msk [vmem:[%s806 + $0x39] sm:$0xff] %vm324, %v779
        %813 = vst.msk [vmem:[%s806 + $0x49] sm:$0xff] %vm324, %v780
        %814 = vst.msk [vmem:[%s806 + $0x51] sm:$0xff] %vm324, %v781
        %815 = vst.msk [vmem:[%s806 + $0x61] sm:$0xff] %vm324, %v782
        %816 = vst.msk [vmem:[%s806 + $0x69] sm:$0xff] %vm324, %v783
        %817 = vst.msk [vmem:[%s806 + $0x79] sm:$0xff] %vm324, %v784
        %818 = vst.msk [vmem:[%s806 + $0x81] sm:$0xff] %vm324, %v785
        %819 = vst.msk [vmem:[%s806 + $0x91] sm:$0xff] %vm324, %v786
        %820 = vst.msk [vmem:[%s806 + $0x99] sm:$0xff] %vm324, %v787
        %821 = vst.msk [vmem:[%s806 + $0xa9] sm:$0xff] %vm324, %v788
        %822 = vst.msk [vmem:[%s806 + $0xb1] sm:$0xff] %vm324, %v789
        %823 = vst.msk [vmem:[%s806 + $0xc1] sm:$0xff] %vm324, %v790
        %824 = vst.msk [vmem:[%s806 + $0xc9] sm:$0xff] %vm324, %v791
        %825 = vst.msk [vmem:[%s806 + $0xd9] sm:$0xff] %vm324, %v792
        %826 = vst.msk [vmem:[%s806 + $0xe1] sm:$0xff] %vm324, %v793
        %827 = vst.msk [vmem:[%s806 + $0xf1] sm:$0xff] %vm324, %v794
        %828 = vst.msk [vmem:[%s806 + $0xf9] sm:$0xff] %vm324, %v795
        %829 = vst.msk [vmem:[%s806 + $0x109] sm:$0xff] %vm324, %v796
        %830 = vst.msk [vmem:[%s806 + $0x111] sm:$0xff] %vm324, %v797
        %831 = vst.msk [vmem:[%s806 + $0x121] sm:$0xff] %vm324, %v798
        %832 = vst.msk [vmem:[%s806 + $0x129] sm:$0xff] %vm324, %v799
        %833 = vst.msk [vmem:[%s806 + $0x139] sm:$0xff] %vm324, %v800
        %834 = vst.msk [vmem:[%s806 + $0x141] sm:$0xff] %vm324, %v801
        %835 = vst.msk [vmem:[%s806 + $0x151] sm:$0xff] %vm324, %v802
        %836 = vst.msk [vmem:[%s806 + $0x159] sm:$0xff] %vm324, %v803
        %837 = vst.msk [vmem:[%s806 + $0x169] sm:$0xff] %vm324, %v804
        %838 = vst.msk [vmem:[%s806 + $0x171] sm:$0xff] %vm324, %v805
        %v839 = vld [vmem:[%s3] sm:$0x7]
        %v840 = vld [vmem:[%s3 + $0x4] sm:$0x7]
        %v841 = vld [vmem:[%s3 + $0x8] sm:$0x7]
        %v842 = vld [vmem:[#allocation2] sm:$0xff]
        %v843 = vld [vmem:[#allocation2 + $0x8] sm:$0xff]
        %v844 = vld [vmem:[#allocation2 + $0x18] sm:$0xff]
        %v845 = vld [vmem:[#allocation2 + $0x20] sm:$0xff]
        %v846 = vld [vmem:[#allocation2 + $0x30] sm:$0xff]
        %v847 = vld [vmem:[#allocation2 + $0x38] sm:$0xff]
        %v848 = vld [vmem:[#allocation2 + $0x48] sm:$0xff]
        %v849 = vld [vmem:[#allocation2 + $0x50] sm:$0xff]
        %v850 = vld [vmem:[#allocation2 + $0x60] sm:$0xff]
        %v851 = vld [vmem:[#allocation2 + $0x68] sm:$0xff]
        %v852 = vld [vmem:[#allocation2 + $0x78] sm:$0xff]
        %v853 = vld [vmem:[#allocation2 + $0x80] sm:$0xff]
        %v854 = vld [vmem:[#allocation2 + $0x90] sm:$0xff]
        %v855 = vld [vmem:[#allocation2 + $0x98] sm:$0xff]
        %v856 = vld [vmem:[#allocation2 + $0xa8] sm:$0xff]
        %v857 = vld [vmem:[#allocation2 + $0xb0] sm:$0xff]
        %v858 = vld [vmem:[#allocation2 + $0xc0] sm:$0xff]
        %v859 = vld [vmem:[#allocation2 + $0xc8] sm:$0xff]
        %v860 = vld [vmem:[#allocation2 + $0xd8] sm:$0xff]
        %v861 = vld [vmem:[#allocation2 + $0xe0] sm:$0xff]
        %v862 = vld [vmem:[#allocation2 + $0xf0] sm:$0xff]
        %v863 = vld [vmem:[#allocation2 + $0xf8] sm:$0xff]
        %v864 = vld [vmem:[#allocation2 + $0x108] sm:$0xff]
        %v865 = vld [vmem:[#allocation2 + $0x110] sm:$0xff]
        %v866 = vld [vmem:[#allocation2 + $0x120] sm:$0xff]
        %v867 = vld [vmem:[#allocation2 + $0x128] sm:$0xff]
        %v868 = vld [vmem:[#allocation2 + $0x138] sm:$0xff]
        %v869 = vld [vmem:[#allocation2 + $0x140] sm:$0xff]
        %v870 = vld [vmem:[#allocation2 + $0x150] sm:$0xff]
        %v871 = vld [vmem:[#allocation2 + $0x158] sm:$0xff]
        %v872 = vld [vmem:[#allocation2 + $0x168] sm:$0xff]
        %v873 = vld [vmem:[#allocation2 + $0x170] sm:$0xff]
        %v874 = vlaneseq
        %v875 = vshrl.u32 %v874, 7
        %v876 = vsub.s32 0, %v875
        %v877 = vrot.slane %v839, %v876
        %v878 = vmul.f32 %v842, %v877
        %v879 = vmul.f32 %v843, %v877
        %v880 = vmul.f32 %v844, %v877
        %v881 = vmul.f32 %v845, %v877
        %v882 = vmul.f32 %v846, %v877
        %v883 = vmul.f32 %v847, %v877
        %v884 = vmul.f32 %v848, %v877
        %v885 = vmul.f32 %v849, %v877
        %v886 = vmul.f32 %v850, %v877
        %v887 = vmul.f32 %v851, %v877
        %v888 = vmul.f32 %v852, %v877
        %v889 = vmul.f32 %v853, %v877
        %v890 = vmul.f32 %v854, %v877
        %v891 = vmul.f32 %v855, %v877
        %v892 = vmul.f32 %v856, %v877
        %v893 = vmul.f32 %v857, %v877
        %v894 = vmul.f32 %v858, %v877
        %v895 = vmul.f32 %v859, %v877
        %v896 = vmul.f32 %v860, %v877
        %v897 = vmul.f32 %v861, %v877
        %v898 = vmul.f32 %v862, %v877
        %v899 = vmul.f32 %v863, %v877
        %v900 = vmul.f32 %v864, %v877
        %v901 = vmul.f32 %v865, %v877
        %v902 = vmul.f32 %v866, %v877
        %v903 = vmul.f32 %v867, %v877
        %v904 = vmul.f32 %v868, %v877
        %v905 = vmul.f32 %v869, %v877
        %v906 = vmul.f32 %v870, %v877
        %v907 = vmul.f32 %v871, %v877
        %v908 = vmul.f32 %v872, %v877
        %v909 = vmul.f32 %v873, %v877
        %v910 = vadd.f32 %v878, 0.0
        %v911 = vadd.f32 %v879, 0.0
        %v912 = vadd.f32 %v880, 0.0
        %v913 = vadd.f32 %v881, 0.0
        %v914 = vadd.f32 %v882, 0.0
        %v915 = vadd.f32 %v883, 0.0
        %v916 = vadd.f32 %v884, 0.0
        %v917 = vadd.f32 %v885, 0.0
        %v918 = vadd.f32 %v886, 0.0
        %v919 = vadd.f32 %v887, 0.0
        %v920 = vadd.f32 %v888, 0.0
        %v921 = vadd.f32 %v889, 0.0
        %v922 = vadd.f32 %v890, 0.0
        %v923 = vadd.f32 %v891, 0.0
        %v924 = vadd.f32 %v892, 0.0
        %v925 = vadd.f32 %v893, 0.0
        %v926 = vadd.f32 %v894, 0.0
        %v927 = vadd.f32 %v895, 0.0
        %v928 = vadd.f32 %v896, 0.0
        %v929 = vadd.f32 %v897, 0.0
        %v930 = vadd.f32 %v898, 0.0
        %v931 = vadd.f32 %v899, 0.0
        %v932 = vadd.f32 %v900, 0.0
        %v933 = vadd.f32 %v901, 0.0
        %v934 = vadd.f32 %v902, 0.0
        %v935 = vadd.f32 %v903, 0.0
        %v936 = vadd.f32 %v904, 0.0
        %v937 = vadd.f32 %v905, 0.0
        %v938 = vadd.f32 %v906, 0.0
        %v939 = vadd.f32 %v907, 0.0
        %v940 = vadd.f32 %v908, 0.0
        %v941 = vadd.f32 %v909, 0.0
        %v942 = vld [vmem:[#allocation2 + $0x1] sm:$0xff]
        %v943 = vld [vmem:[#allocation2 + $0x9] sm:$0xff]
        %v944 = vld [vmem:[#allocation2 + $0x19] sm:$0xff]
        %v945 = vld [vmem:[#allocation2 + $0x21] sm:$0xff]
        %v946 = vld [vmem:[#allocation2 + $0x31] sm:$0xff]
        %v947 = vld [vmem:[#allocation2 + $0x39] sm:$0xff]
        %v948 = vld [vmem:[#allocation2 + $0x49] sm:$0xff]
        %v949 = vld [vmem:[#allocation2 + $0x51] sm:$0xff]
        %v950 = vld [vmem:[#allocation2 + $0x61] sm:$0xff]
        %v951 = vld [vmem:[#allocation2 + $0x69] sm:$0xff]
        %v952 = vld [vmem:[#allocation2 + $0x79] sm:$0xff]
        %v953 = vld [vmem:[#allocation2 + $0x81] sm:$0xff]
        %v954 = vld [vmem:[#allocation2 + $0x91] sm:$0xff]
        %v955 = vld [vmem:[#allocation2 + $0x99] sm:$0xff]
        %v956 = vld [vmem:[#allocation2 + $0xa9] sm:$0xff]
        %v957 = vld [vmem:[#allocation2 + $0xb1] sm:$0xff]
        %v958 = vld [vmem:[#allocation2 + $0xc1] sm:$0xff]
        %v959 = vld [vmem:[#allocation2 + $0xc9] sm:$0xff]
        %v960 = vld [vmem:[#allocation2 + $0xd9] sm:$0xff]
        %v961 = vld [vmem:[#allocation2 + $0xe1] sm:$0xff]
        %v962 = vld [vmem:[#allocation2 + $0xf1] sm:$0xff]
        %v963 = vld [vmem:[#allocation2 + $0xf9] sm:$0xff]
        %v964 = vld [vmem:[#allocation2 + $0x109] sm:$0xff]
        %v965 = vld [vmem:[#allocation2 + $0x111] sm:$0xff]
        %v966 = vld [vmem:[#allocation2 + $0x121] sm:$0xff]
        %v967 = vld [vmem:[#allocation2 + $0x129] sm:$0xff]
        %v968 = vld [vmem:[#allocation2 + $0x139] sm:$0xff]
        %v969 = vld [vmem:[#allocation2 + $0x141] sm:$0xff]
        %v970 = vld [vmem:[#allocation2 + $0x151] sm:$0xff]
        %v971 = vld [vmem:[#allocation2 + $0x159] sm:$0xff]
        %v972 = vld [vmem:[#allocation2 + $0x169] sm:$0xff]
        %v973 = vld [vmem:[#allocation2 + $0x171] sm:$0xff]
        %v974 = vlaneseq
        %v975 = vshrl.u32 %v974, 7
        %v976 = vsub.s32 1, %v975
        %v977 = vrot.slane %v839, %v976
        %v978 = vmul.f32 %v942, %v977
        %v979 = vmul.f32 %v943, %v977
        %v980 = vmul.f32 %v944, %v977
        %v981 = vmul.f32 %v945, %v977
        %v982 = vmul.f32 %v946, %v977
        %v983 = vmul.f32 %v947, %v977
        %v984 = vmul.f32 %v948, %v977
        %v985 = vmul.f32 %v949, %v977
        %v986 = vmul.f32 %v950, %v977
        %v987 = vmul.f32 %v951, %v977
        %v988 = vmul.f32 %v952, %v977
        %v989 = vmul.f32 %v953, %v977
        %v990 = vmul.f32 %v954, %v977
        %v991 = vmul.f32 %v955, %v977
        %v992 = vmul.f32 %v956, %v977
        %v993 = vmul.f32 %v957, %v977
        %v994 = vmul.f32 %v958, %v977
        %v995 = vmul.f32 %v959, %v977
        %v996 = vmul.f32 %v960, %v977
        %v997 = vmul.f32 %v961, %v977
        %v998 = vmul.f32 %v962, %v977
        %v999 = vmul.f32 %v963, %v977
        %v1000 = vmul.f32 %v964, %v977
        %v1001 = vmul.f32 %v965, %v977
        %v1002 = vmul.f32 %v966, %v977
        %v1003 = vmul.f32 %v967, %v977
        %v1004 = vmul.f32 %v968, %v977
        %v1005 = vmul.f32 %v969, %v977
        %v1006 = vmul.f32 %v970, %v977
        %v1007 = vmul.f32 %v971, %v977
        %v1008 = vmul.f32 %v972, %v977
        %v1009 = vmul.f32 %v973, %v977
        %v1010 = vadd.f32 %v910, %v978
        %v1011 = vadd.f32 %v911, %v979
        %v1012 = vadd.f32 %v912, %v980
        %v1013 = vadd.f32 %v913, %v981
        %v1014 = vadd.f32 %v914, %v982
        %v1015 = vadd.f32 %v915, %v983
        %v1016 = vadd.f32 %v916, %v984
        %v1017 = vadd.f32 %v917, %v985
        %v1018 = vadd.f32 %v918, %v986
        %v1019 = vadd.f32 %v919, %v987
        %v1020 = vadd.f32 %v920, %v988
        %v1021 = vadd.f32 %v921, %v989
        %v1022 = vadd.f32 %v922, %v990
        %v1023 = vadd.f32 %v923, %v991
        %v1024 = vadd.f32 %v924, %v992
        %v1025 = vadd.f32 %v925, %v993
        %v1026 = vadd.f32 %v926, %v994
        %v1027 = vadd.f32 %v927, %v995
        %v1028 = vadd.f32 %v928, %v996
        %v1029 = vadd.f32 %v929, %v997
        %v1030 = vadd.f32 %v930, %v998
        %v1031 = vadd.f32 %v931, %v999
        %v1032 = vadd.f32 %v932, %v1000
        %v1033 = vadd.f32 %v933, %v1001
        %v1034 = vadd.f32 %v934, %v1002
        %v1035 = vadd.f32 %v935, %v1003
        %v1036 = vadd.f32 %v936, %v1004
        %v1037 = vadd.f32 %v937, %v1005
        %v1038 = vadd.f32 %v938, %v1006
        %v1039 = vadd.f32 %v939, %v1007
        %v1040 = vadd.f32 %v940, %v1008
        %v1041 = vadd.f32 %v941, %v1009
        %v1042 = vld [vmem:[#allocation2 + $0x2] sm:$0xff]
        %v1043 = vld [vmem:[#allocation2 + $0xa] sm:$0xff]
        %v1044 = vld [vmem:[#allocation2 + $0x1a] sm:$0xff]
        %v1045 = vld [vmem:[#allocation2 + $0x22] sm:$0xff]
        %v1046 = vld [vmem:[#allocation2 + $0x32] sm:$0xff]
        %v1047 = vld [vmem:[#allocation2 + $0x3a] sm:$0xff]
        %v1048 = vld [vmem:[#allocation2 + $0x4a] sm:$0xff]
        %v1049 = vld [vmem:[#allocation2 + $0x52] sm:$0xff]
        %v1050 = vld [vmem:[#allocation2 + $0x62] sm:$0xff]
        %v1051 = vld [vmem:[#allocation2 + $0x6a] sm:$0xff]
        %v1052 = vld [vmem:[#allocation2 + $0x7a] sm:$0xff]
        %v1053 = vld [vmem:[#allocation2 + $0x82] sm:$0xff]
        %v1054 = vld [vmem:[#allocation2 + $0x92] sm:$0xff]
        %v1055 = vld [vmem:[#allocation2 + $0x9a] sm:$0xff]
        %v1056 = vld [vmem:[#allocation2 + $0xaa] sm:$0xff]
        %v1057 = vld [vmem:[#allocation2 + $0xb2] sm:$0xff]
        %v1058 = vld [vmem:[#allocation2 + $0xc2] sm:$0xff]
        %v1059 = vld [vmem:[#allocation2 + $0xca] sm:$0xff]
        %v1060 = vld [vmem:[#allocation2 + $0xda] sm:$0xff]
        %v1061 = vld [vmem:[#allocation2 + $0xe2] sm:$0xff]
        %v1062 = vld [vmem:[#allocation2 + $0xf2] sm:$0xff]
        %v1063 = vld [vmem:[#allocation2 + $0xfa] sm:$0xff]
        %v1064 = vld [vmem:[#allocation2 + $0x10a] sm:$0xff]
        %v1065 = vld [vmem:[#allocation2 + $0x112] sm:$0xff]
        %v1066 = vld [vmem:[#allocation2 + $0x122] sm:$0xff]
        %v1067 = vld [vmem:[#allocation2 + $0x12a] sm:$0xff]
        %v1068 = vld [vmem:[#allocation2 + $0x13a] sm:$0xff]
        %v1069 = vld [vmem:[#allocation2 + $0x142] sm:$0xff]
        %v1070 = vld [vmem:[#allocation2 + $0x152] sm:$0xff]
        %v1071 = vld [vmem:[#allocation2 + $0x15a] sm:$0xff]
        %v1072 = vld [vmem:[#allocation2 + $0x16a] sm:$0xff]
        %v1073 = vld [vmem:[#allocation2 + $0x172] sm:$0xff]
        %v1074 = vlaneseq
        %v1075 = vshrl.u32 %v1074, 7
        %v1076 = vsub.s32 2, %v1075
        %v1077 = vrot.slane %v839, %v1076
        %v1078 = vmul.f32 %v1042, %v1077
        %v1079 = vmul.f32 %v1043, %v1077
        %v1080 = vmul.f32 %v1044, %v1077
        %v1081 = vmul.f32 %v1045, %v1077
        %v1082 = vmul.f32 %v1046, %v1077
        %v1083 = vmul.f32 %v1047, %v1077
        %v1084 = vmul.f32 %v1048, %v1077
        %v1085 = vmul.f32 %v1049, %v1077
        %v1086 = vmul.f32 %v1050, %v1077
        %v1087 = vmul.f32 %v1051, %v1077
        %v1088 = vmul.f32 %v1052, %v1077
        %v1089 = vmul.f32 %v1053, %v1077
        %v1090 = vmul.f32 %v1054, %v1077
        %v1091 = vmul.f32 %v1055, %v1077
        %v1092 = vmul.f32 %v1056, %v1077
        %v1093 = vmul.f32 %v1057, %v1077
        %v1094 = vmul.f32 %v1058, %v1077
        %v1095 = vmul.f32 %v1059, %v1077
        %v1096 = vmul.f32 %v1060, %v1077
        %v1097 = vmul.f32 %v1061, %v1077
        %v1098 = vmul.f32 %v1062, %v1077
        %v1099 = vmul.f32 %v1063, %v1077
        %v1100 = vmul.f32 %v1064, %v1077
        %v1101 = vmul.f32 %v1065, %v1077
        %v1102 = vmul.f32 %v1066, %v1077
        %v1103 = vmul.f32 %v1067, %v1077
        %v1104 = vmul.f32 %v1068, %v1077
        %v1105 = vmul.f32 %v1069, %v1077
        %v1106 = vmul.f32 %v1070, %v1077
        %v1107 = vmul.f32 %v1071, %v1077
        %v1108 = vmul.f32 %v1072, %v1077
        %v1109 = vmul.f32 %v1073, %v1077
        %v1110 = vadd.f32 %v1010, %v1078
        %v1111 = vadd.f32 %v1011, %v1079
        %v1112 = vadd.f32 %v1012, %v1080
        %v1113 = vadd.f32 %v1013, %v1081
        %v1114 = vadd.f32 %v1014, %v1082
        %v1115 = vadd.f32 %v1015, %v1083
        %v1116 = vadd.f32 %v1016, %v1084
        %v1117 = vadd.f32 %v1017, %v1085
        %v1118 = vadd.f32 %v1018, %v1086
        %v1119 = vadd.f32 %v1019, %v1087
        %v1120 = vadd.f32 %v1020, %v1088
        %v1121 = vadd.f32 %v1021, %v1089
        %v1122 = vadd.f32 %v1022, %v1090
        %v1123 = vadd.f32 %v1023, %v1091
        %v1124 = vadd.f32 %v1024, %v1092
        %v1125 = vadd.f32 %v1025, %v1093
        %v1126 = vadd.f32 %v1026, %v1094
        %v1127 = vadd.f32 %v1027, %v1095
        %v1128 = vadd.f32 %v1028, %v1096
        %v1129 = vadd.f32 %v1029, %v1097
        %v1130 = vadd.f32 %v1030, %v1098
        %v1131 = vadd.f32 %v1031, %v1099
        %v1132 = vadd.f32 %v1032, %v1100
        %v1133 = vadd.f32 %v1033, %v1101
        %v1134 = vadd.f32 %v1034, %v1102
        %v1135 = vadd.f32 %v1035, %v1103
        %v1136 = vadd.f32 %v1036, %v1104
        %v1137 = vadd.f32 %v1037, %v1105
        %v1138 = vadd.f32 %v1038, %v1106
        %v1139 = vadd.f32 %v1039, %v1107
        %v1140 = vadd.f32 %v1040, %v1108
        %v1141 = vadd.f32 %v1041, %v1109
        %v1142 = vld [vmem:[%s806] sm:$0xff]
        %v1143 = vld [vmem:[%s806 + $0x8] sm:$0xff]
        %v1144 = vld [vmem:[%s806 + $0x18] sm:$0xff]
        %v1145 = vld [vmem:[%s806 + $0x20] sm:$0xff]
        %v1146 = vld [vmem:[%s806 + $0x30] sm:$0xff]
        %v1147 = vld [vmem:[%s806 + $0x38] sm:$0xff]
        %v1148 = vld [vmem:[%s806 + $0x48] sm:$0xff]
        %v1149 = vld [vmem:[%s806 + $0x50] sm:$0xff]
        %v1150 = vld [vmem:[%s806 + $0x60] sm:$0xff]
        %v1151 = vld [vmem:[%s806 + $0x68] sm:$0xff]
        %v1152 = vld [vmem:[%s806 + $0x78] sm:$0xff]
        %v1153 = vld [vmem:[%s806 + $0x80] sm:$0xff]
        %v1154 = vld [vmem:[%s806 + $0x90] sm:$0xff]
        %v1155 = vld [vmem:[%s806 + $0x98] sm:$0xff]
        %v1156 = vld [vmem:[%s806 + $0xa8] sm:$0xff]
        %v1157 = vld [vmem:[%s806 + $0xb0] sm:$0xff]
        %v1158 = vld [vmem:[%s806 + $0xc0] sm:$0xff]
        %v1159 = vld [vmem:[%s806 + $0xc8] sm:$0xff]
        %v1160 = vld [vmem:[%s806 + $0xd8] sm:$0xff]
        %v1161 = vld [vmem:[%s806 + $0xe0] sm:$0xff]
        %v1162 = vld [vmem:[%s806 + $0xf0] sm:$0xff]
        %v1163 = vld [vmem:[%s806 + $0xf8] sm:$0xff]
        %v1164 = vld [vmem:[%s806 + $0x108] sm:$0xff]
        %v1165 = vld [vmem:[%s806 + $0x110] sm:$0xff]
        %v1166 = vld [vmem:[%s806 + $0x120] sm:$0xff]
        %v1167 = vld [vmem:[%s806 + $0x128] sm:$0xff]
        %v1168 = vld [vmem:[%s806 + $0x138] sm:$0xff]
        %v1169 = vld [vmem:[%s806 + $0x140] sm:$0xff]
        %v1170 = vld [vmem:[%s806 + $0x150] sm:$0xff]
        %v1171 = vld [vmem:[%s806 + $0x158] sm:$0xff]
        %v1172 = vld [vmem:[%s806 + $0x168] sm:$0xff]
        %v1173 = vld [vmem:[%s806 + $0x170] sm:$0xff]
        %v1174 = vlaneseq
        %v1175 = vshrl.u32 %v1174, 7
        %v1176 = vsub.s32 0, %v1175
        %v1177 = vrot.slane %v840, %v1176
        %v1178 = vmul.f32 %v1142, %v1177
        %v1179 = vmul.f32 %v1143, %v1177
        %v1180 = vmul.f32 %v1144, %v1177
        %v1181 = vmul.f32 %v1145, %v1177
        %v1182 = vmul.f32 %v1146, %v1177
        %v1183 = vmul.f32 %v1147, %v1177
        %v1184 = vmul.f32 %v1148, %v1177
        %v1185 = vmul.f32 %v1149, %v1177
        %v1186 = vmul.f32 %v1150, %v1177
        %v1187 = vmul.f32 %v1151, %v1177
        %v1188 = vmul.f32 %v1152, %v1177
        %v1189 = vmul.f32 %v1153, %v1177
        %v1190 = vmul.f32 %v1154, %v1177
        %v1191 = vmul.f32 %v1155, %v1177
        %v1192 = vmul.f32 %v1156, %v1177
        %v1193 = vmul.f32 %v1157, %v1177
        %v1194 = vmul.f32 %v1158, %v1177
        %v1195 = vmul.f32 %v1159, %v1177
        %v1196 = vmul.f32 %v1160, %v1177
        %v1197 = vmul.f32 %v1161, %v1177
        %v1198 = vmul.f32 %v1162, %v1177
        %v1199 = vmul.f32 %v1163, %v1177
        %v1200 = vmul.f32 %v1164, %v1177
        %v1201 = vmul.f32 %v1165, %v1177
        %v1202 = vmul.f32 %v1166, %v1177
        %v1203 = vmul.f32 %v1167, %v1177
        %v1204 = vmul.f32 %v1168, %v1177
        %v1205 = vmul.f32 %v1169, %v1177
        %v1206 = vmul.f32 %v1170, %v1177
        %v1207 = vmul.f32 %v1171, %v1177
        %v1208 = vmul.f32 %v1172, %v1177
        %v1209 = vmul.f32 %v1173, %v1177
        %v1210 = vadd.f32 %v1110, %v1178
        %v1211 = vadd.f32 %v1111, %v1179
        %v1212 = vadd.f32 %v1112, %v1180
        %v1213 = vadd.f32 %v1113, %v1181
        %v1214 = vadd.f32 %v1114, %v1182
        %v1215 = vadd.f32 %v1115, %v1183
        %v1216 = vadd.f32 %v1116, %v1184
        %v1217 = vadd.f32 %v1117, %v1185
        %v1218 = vadd.f32 %v1118, %v1186
        %v1219 = vadd.f32 %v1119, %v1187
        %v1220 = vadd.f32 %v1120, %v1188
        %v1221 = vadd.f32 %v1121, %v1189
        %v1222 = vadd.f32 %v1122, %v1190
        %v1223 = vadd.f32 %v1123, %v1191
        %v1224 = vadd.f32 %v1124, %v1192
        %v1225 = vadd.f32 %v1125, %v1193
        %v1226 = vadd.f32 %v1126, %v1194
        %v1227 = vadd.f32 %v1127, %v1195
        %v1228 = vadd.f32 %v1128, %v1196
        %v1229 = vadd.f32 %v1129, %v1197
        %v1230 = vadd.f32 %v1130, %v1198
        %v1231 = vadd.f32 %v1131, %v1199
        %v1232 = vadd.f32 %v1132, %v1200
        %v1233 = vadd.f32 %v1133, %v1201
        %v1234 = vadd.f32 %v1134, %v1202
        %v1235 = vadd.f32 %v1135, %v1203
        %v1236 = vadd.f32 %v1136, %v1204
        %v1237 = vadd.f32 %v1137, %v1205
        %v1238 = vadd.f32 %v1138, %v1206
        %v1239 = vadd.f32 %v1139, %v1207
        %v1240 = vadd.f32 %v1140, %v1208
        %v1241 = vadd.f32 %v1141, %v1209
        %v1242 = vld [vmem:[%s806 + $0x1] sm:$0xff]
        %v1243 = vld [vmem:[%s806 + $0x9] sm:$0xff]
        %v1244 = vld [vmem:[%s806 + $0x19] sm:$0xff]
        %v1245 = vld [vmem:[%s806 + $0x21] sm:$0xff]
        %v1246 = vld [vmem:[%s806 + $0x31] sm:$0xff]
        %v1247 = vld [vmem:[%s806 + $0x39] sm:$0xff]
        %v1248 = vld [vmem:[%s806 + $0x49] sm:$0xff]
        %v1249 = vld [vmem:[%s806 + $0x51] sm:$0xff]
        %v1250 = vld [vmem:[%s806 + $0x61] sm:$0xff]
        %v1251 = vld [vmem:[%s806 + $0x69] sm:$0xff]
        %v1252 = vld [vmem:[%s806 + $0x79] sm:$0xff]
        %v1253 = vld [vmem:[%s806 + $0x81] sm:$0xff]
        %v1254 = vld [vmem:[%s806 + $0x91] sm:$0xff]
        %v1255 = vld [vmem:[%s806 + $0x99] sm:$0xff]
        %v1256 = vld [vmem:[%s806 + $0xa9] sm:$0xff]
        %v1257 = vld [vmem:[%s806 + $0xb1] sm:$0xff]
        %v1258 = vld [vmem:[%s806 + $0xc1] sm:$0xff]
        %v1259 = vld [vmem:[%s806 + $0xc9] sm:$0xff]
        %v1260 = vld [vmem:[%s806 + $0xd9] sm:$0xff]
        %v1261 = vld [vmem:[%s806 + $0xe1] sm:$0xff]
        %v1262 = vld [vmem:[%s806 + $0xf1] sm:$0xff]
        %v1263 = vld [vmem:[%s806 + $0xf9] sm:$0xff]
        %v1264 = vld [vmem:[%s806 + $0x109] sm:$0xff]
        %v1265 = vld [vmem:[%s806 + $0x111] sm:$0xff]
        %v1266 = vld [vmem:[%s806 + $0x121] sm:$0xff]
        %v1267 = vld [vmem:[%s806 + $0x129] sm:$0xff]
        %v1268 = vld [vmem:[%s806 + $0x139] sm:$0xff]
        %v1269 = vld [vmem:[%s806 + $0x141] sm:$0xff]
        %v1270 = vld [vmem:[%s806 + $0x151] sm:$0xff]
        %v1271 = vld [vmem:[%s806 + $0x159] sm:$0xff]
        %v1272 = vld [vmem:[%s806 + $0x169] sm:$0xff]
        %v1273 = vld [vmem:[%s806 + $0x171] sm:$0xff]
        %v1274 = vlaneseq
        %v1275 = vshrl.u32 %v1274, 7
        %v1276 = vsub.s32 1, %v1275
        %v1277 = vrot.slane %v840, %v1276
        %v1278 = vmul.f32 %v1242, %v1277
        %v1279 = vmul.f32 %v1243, %v1277
        %v1280 = vmul.f32 %v1244, %v1277
        %v1281 = vmul.f32 %v1245, %v1277
        %v1282 = vmul.f32 %v1246, %v1277
        %v1283 = vmul.f32 %v1247, %v1277
        %v1284 = vmul.f32 %v1248, %v1277
        %v1285 = vmul.f32 %v1249, %v1277
        %v1286 = vmul.f32 %v1250, %v1277
        %v1287 = vmul.f32 %v1251, %v1277
        %v1288 = vmul.f32 %v1252, %v1277
        %v1289 = vmul.f32 %v1253, %v1277
        %v1290 = vmul.f32 %v1254, %v1277
        %v1291 = vmul.f32 %v1255, %v1277
        %v1292 = vmul.f32 %v1256, %v1277
        %v1293 = vmul.f32 %v1257, %v1277
        %v1294 = vmul.f32 %v1258, %v1277
        %v1295 = vmul.f32 %v1259, %v1277
        %v1296 = vmul.f32 %v1260, %v1277
        %v1297 = vmul.f32 %v1261, %v1277
        %v1298 = vmul.f32 %v1262, %v1277
        %v1299 = vmul.f32 %v1263, %v1277
        %v1300 = vmul.f32 %v1264, %v1277
        %v1301 = vmul.f32 %v1265, %v1277
        %v1302 = vmul.f32 %v1266, %v1277
        %v1303 = vmul.f32 %v1267, %v1277
        %v1304 = vmul.f32 %v1268, %v1277
        %v1305 = vmul.f32 %v1269, %v1277
        %v1306 = vmul.f32 %v1270, %v1277
        %v1307 = vmul.f32 %v1271, %v1277
        %v1308 = vmul.f32 %v1272, %v1277
        %v1309 = vmul.f32 %v1273, %v1277
        %v1310 = vadd.f32 %v1210, %v1278
        %v1311 = vadd.f32 %v1211, %v1279
        %v1312 = vadd.f32 %v1212, %v1280
        %v1313 = vadd.f32 %v1213, %v1281
        %v1314 = vadd.f32 %v1214, %v1282
        %v1315 = vadd.f32 %v1215, %v1283
        %v1316 = vadd.f32 %v1216, %v1284
        %v1317 = vadd.f32 %v1217, %v1285
        %v1318 = vadd.f32 %v1218, %v1286
        %v1319 = vadd.f32 %v1219, %v1287
        %v1320 = vadd.f32 %v1220, %v1288
        %v1321 = vadd.f32 %v1221, %v1289
        %v1322 = vadd.f32 %v1222, %v1290
        %v1323 = vadd.f32 %v1223, %v1291
        %v1324 = vadd.f32 %v1224, %v1292
        %v1325 = vadd.f32 %v1225, %v1293
        %v1326 = vadd.f32 %v1226, %v1294
        %v1327 = vadd.f32 %v1227, %v1295
        %v1328 = vadd.f32 %v1228, %v1296
        %v1329 = vadd.f32 %v1229, %v1297
        %v1330 = vadd.f32 %v1230, %v1298
        %v1331 = vadd.f32 %v1231, %v1299
        %v1332 = vadd.f32 %v1232, %v1300
        %v1333 = vadd.f32 %v1233, %v1301
        %v1334 = vadd.f32 %v1234, %v1302
        %v1335 = vadd.f32 %v1235, %v1303
        %v1336 = vadd.f32 %v1236, %v1304
        %v1337 = vadd.f32 %v1237, %v1305
        %v1338 = vadd.f32 %v1238, %v1306
        %v1339 = vadd.f32 %v1239, %v1307
        %v1340 = vadd.f32 %v1240, %v1308
        %v1341 = vadd.f32 %v1241, %v1309
        %v1342 = vld [vmem:[%s806 + $0x2] sm:$0xff]
        %v1343 = vld [vmem:[%s806 + $0xa] sm:$0xff]
        %v1344 = vld [vmem:[%s806 + $0x1a] sm:$0xff]
        %v1345 = vld [vmem:[%s806 + $0x22] sm:$0xff]
        %v1346 = vld [vmem:[%s806 + $0x32] sm:$0xff]
        %v1347 = vld [vmem:[%s806 + $0x3a] sm:$0xff]
        %v1348 = vld [vmem:[%s806 + $0x4a] sm:$0xff]
        %v1349 = vld [vmem:[%s806 + $0x52] sm:$0xff]
        %v1350 = vld [vmem:[%s806 + $0x62] sm:$0xff]
        %v1351 = vld [vmem:[%s806 + $0x6a] sm:$0xff]
        %v1352 = vld [vmem:[%s806 + $0x7a] sm:$0xff]
        %v1353 = vld [vmem:[%s806 + $0x82] sm:$0xff]
        %v1354 = vld [vmem:[%s806 + $0x92] sm:$0xff]
        %v1355 = vld [vmem:[%s806 + $0x9a] sm:$0xff]
        %v1356 = vld [vmem:[%s806 + $0xaa] sm:$0xff]
        %v1357 = vld [vmem:[%s806 + $0xb2] sm:$0xff]
        %v1358 = vld [vmem:[%s806 + $0xc2] sm:$0xff]
        %v1359 = vld [vmem:[%s806 + $0xca] sm:$0xff]
        %v1360 = vld [vmem:[%s806 + $0xda] sm:$0xff]
        %v1361 = vld [vmem:[%s806 + $0xe2] sm:$0xff]
        %v1362 = vld [vmem:[%s806 + $0xf2] sm:$0xff]
        %v1363 = vld [vmem:[%s806 + $0xfa] sm:$0xff]
        %v1364 = vld [vmem:[%s806 + $0x10a] sm:$0xff]
        %v1365 = vld [vmem:[%s806 + $0x112] sm:$0xff]
        %v1366 = vld [vmem:[%s806 + $0x122] sm:$0xff]
        %v1367 = vld [vmem:[%s806 + $0x12a] sm:$0xff]
        %v1368 = vld [vmem:[%s806 + $0x13a] sm:$0xff]
        %v1369 = vld [vmem:[%s806 + $0x142] sm:$0xff]
        %v1370 = vld [vmem:[%s806 + $0x152] sm:$0xff]
        %v1371 = vld [vmem:[%s806 + $0x15a] sm:$0xff]
        %v1372 = vld [vmem:[%s806 + $0x16a] sm:$0xff]
        %v1373 = vld [vmem:[%s806 + $0x172] sm:$0xff]
        %v1374 = vlaneseq
        %v1375 = vshrl.u32 %v1374, 7
        %v1376 = vsub.s32 2, %v1375
        %v1377 = vrot.slane %v840, %v1376
        %v1378 = vmul.f32 %v1342, %v1377
        %v1379 = vmul.f32 %v1343, %v1377
        %v1380 = vmul.f32 %v1344, %v1377
        %v1381 = vmul.f32 %v1345, %v1377
        %v1382 = vmul.f32 %v1346, %v1377
        %v1383 = vmul.f32 %v1347, %v1377
        %v1384 = vmul.f32 %v1348, %v1377
        %v1385 = vmul.f32 %v1349, %v1377
        %v1386 = vmul.f32 %v1350, %v1377
        %v1387 = vmul.f32 %v1351, %v1377
        %v1388 = vmul.f32 %v1352, %v1377
        %v1389 = vmul.f32 %v1353, %v1377
        %v1390 = vmul.f32 %v1354, %v1377
        %v1391 = vmul.f32 %v1355, %v1377
        %v1392 = vmul.f32 %v1356, %v1377
        %v1393 = vmul.f32 %v1357, %v1377
        %v1394 = vmul.f32 %v1358, %v1377
        %v1395 = vmul.f32 %v1359, %v1377
        %v1396 = vmul.f32 %v1360, %v1377
        %v1397 = vmul.f32 %v1361, %v1377
        %v1398 = vmul.f32 %v1362, %v1377
        %v1399 = vmul.f32 %v1363, %v1377
        %v1400 = vmul.f32 %v1364, %v1377
        %v1401 = vmul.f32 %v1365, %v1377
        %v1402 = vmul.f32 %v1366, %v1377
        %v1403 = vmul.f32 %v1367, %v1377
        %v1404 = vmul.f32 %v1368, %v1377
        %v1405 = vmul.f32 %v1369, %v1377
        %v1406 = vmul.f32 %v1370, %v1377
        %v1407 = vmul.f32 %v1371, %v1377
        %v1408 = vmul.f32 %v1372, %v1377
        %v1409 = vmul.f32 %v1373, %v1377
        %v1410 = vadd.f32 %v1310, %v1378
        %v1411 = vadd.f32 %v1311, %v1379
        %v1412 = vadd.f32 %v1312, %v1380
        %v1413 = vadd.f32 %v1313, %v1381
        %v1414 = vadd.f32 %v1314, %v1382
        %v1415 = vadd.f32 %v1315, %v1383
        %v1416 = vadd.f32 %v1316, %v1384
        %v1417 = vadd.f32 %v1317, %v1385
        %v1418 = vadd.f32 %v1318, %v1386
        %v1419 = vadd.f32 %v1319, %v1387
        %v1420 = vadd.f32 %v1320, %v1388
        %v1421 = vadd.f32 %v1321, %v1389
        %v1422 = vadd.f32 %v1322, %v1390
        %v1423 = vadd.f32 %v1323, %v1391
        %v1424 = vadd.f32 %v1324, %v1392
        %v1425 = vadd.f32 %v1325, %v1393
        %v1426 = vadd.f32 %v1326, %v1394
        %v1427 = vadd.f32 %v1327, %v1395
        %v1428 = vadd.f32 %v1328, %v1396
        %v1429 = vadd.f32 %v1329, %v1397
        %v1430 = vadd.f32 %v1330, %v1398
        %v1431 = vadd.f32 %v1331, %v1399
        %v1432 = vadd.f32 %v1332, %v1400
        %v1433 = vadd.f32 %v1333, %v1401
        %v1434 = vadd.f32 %v1334, %v1402
        %v1435 = vadd.f32 %v1335, %v1403
        %v1436 = vadd.f32 %v1336, %v1404
        %v1437 = vadd.f32 %v1337, %v1405
        %v1438 = vadd.f32 %v1338, %v1406
        %v1439 = vadd.f32 %v1339, %v1407
        %v1440 = vadd.f32 %v1340, %v1408
        %v1441 = vadd.f32 %v1341, %v1409
        %s1442 = scalar_lea.vmem [#allocation2], 48
        %v1443 = vld [vmem:[%s1442] sm:$0xff]
        %v1444 = vld [vmem:[%s1442 + $0x8] sm:$0xff]
        %v1445 = vld [vmem:[%s1442 + $0x18] sm:$0xff]
        %v1446 = vld [vmem:[%s1442 + $0x20] sm:$0xff]
        %v1447 = vld [vmem:[%s1442 + $0x30] sm:$0xff]
        %v1448 = vld [vmem:[%s1442 + $0x38] sm:$0xff]
        %v1449 = vld [vmem:[%s1442 + $0x48] sm:$0xff]
        %v1450 = vld [vmem:[%s1442 + $0x50] sm:$0xff]
        %v1451 = vld [vmem:[%s1442 + $0x60] sm:$0xff]
        %v1452 = vld [vmem:[%s1442 + $0x68] sm:$0xff]
        %v1453 = vld [vmem:[%s1442 + $0x78] sm:$0xff]
        %v1454 = vld [vmem:[%s1442 + $0x80] sm:$0xff]
        %v1455 = vld [vmem:[%s1442 + $0x90] sm:$0xff]
        %v1456 = vld [vmem:[%s1442 + $0x98] sm:$0xff]
        %v1457 = vld [vmem:[%s1442 + $0xa8] sm:$0xff]
        %v1458 = vld [vmem:[%s1442 + $0xb0] sm:$0xff]
        %v1459 = vld [vmem:[%s1442 + $0xc0] sm:$0xff]
        %v1460 = vld [vmem:[%s1442 + $0xc8] sm:$0xff]
        %v1461 = vld [vmem:[%s1442 + $0xd8] sm:$0xff]
        %v1462 = vld [vmem:[%s1442 + $0xe0] sm:$0xff]
        %v1463 = vld [vmem:[%s1442 + $0xf0] sm:$0xff]
        %v1464 = vld [vmem:[%s1442 + $0xf8] sm:$0xff]
        %v1465 = vld [vmem:[%s1442 + $0x108] sm:$0xff]
        %v1466 = vld [vmem:[%s1442 + $0x110] sm:$0xff]
        %v1467 = vld [vmem:[%s1442 + $0x120] sm:$0xff]
        %v1468 = vld [vmem:[%s1442 + $0x128] sm:$0xff]
        %v1469 = vld [vmem:[%s1442 + $0x138] sm:$0xff]
        %v1470 = vld [vmem:[%s1442 + $0x140] sm:$0xff]
        %v1471 = vld [vmem:[%s1442 + $0x150] sm:$0xff]
        %v1472 = vld [vmem:[%s1442 + $0x158] sm:$0xff]
        %v1473 = vld [vmem:[%s1442 + $0x168] sm:$0xff]
        %v1474 = vld [vmem:[%s1442 + $0x170] sm:$0xff]
        %v1475 = vlaneseq
        %v1476 = vshrl.u32 %v1475, 7
        %v1477 = vsub.s32 0, %v1476
        %v1478 = vrot.slane %v841, %v1477
        %v1479 = vmul.f32 %v1443, %v1478
        %v1480 = vmul.f32 %v1444, %v1478
        %v1481 = vmul.f32 %v1445, %v1478
        %v1482 = vmul.f32 %v1446, %v1478
        %v1483 = vmul.f32 %v1447, %v1478
        %v1484 = vmul.f32 %v1448, %v1478
        %v1485 = vmul.f32 %v1449, %v1478
        %v1486 = vmul.f32 %v1450, %v1478
        %v1487 = vmul.f32 %v1451, %v1478
        %v1488 = vmul.f32 %v1452, %v1478
        %v1489 = vmul.f32 %v1453, %v1478
        %v1490 = vmul.f32 %v1454, %v1478
        %v1491 = vmul.f32 %v1455, %v1478
        %v1492 = vmul.f32 %v1456, %v1478
        %v1493 = vmul.f32 %v1457, %v1478
        %v1494 = vmul.f32 %v1458, %v1478
        %v1495 = vmul.f32 %v1459, %v1478
        %v1496 = vmul.f32 %v1460, %v1478
        %v1497 = vmul.f32 %v1461, %v1478
        %v1498 = vmul.f32 %v1462, %v1478
        %v1499 = vmul.f32 %v1463, %v1478
        %v1500 = vmul.f32 %v1464, %v1478
        %v1501 = vmul.f32 %v1465, %v1478
        %v1502 = vmul.f32 %v1466, %v1478
        %v1503 = vmul.f32 %v1467, %v1478
        %v1504 = vmul.f32 %v1468, %v1478
        %v1505 = vmul.f32 %v1469, %v1478
        %v1506 = vmul.f32 %v1470, %v1478
        %v1507 = vmul.f32 %v1471, %v1478
        %v1508 = vmul.f32 %v1472, %v1478
        %v1509 = vmul.f32 %v1473, %v1478
        %v1510 = vmul.f32 %v1474, %v1478
        %v1511 = vadd.f32 %v1410, %v1479
        %v1512 = vadd.f32 %v1411, %v1480
        %v1513 = vadd.f32 %v1412, %v1481
        %v1514 = vadd.f32 %v1413, %v1482
        %v1515 = vadd.f32 %v1414, %v1483
        %v1516 = vadd.f32 %v1415, %v1484
        %v1517 = vadd.f32 %v1416, %v1485
        %v1518 = vadd.f32 %v1417, %v1486
        %v1519 = vadd.f32 %v1418, %v1487
        %v1520 = vadd.f32 %v1419, %v1488
        %v1521 = vadd.f32 %v1420, %v1489
        %v1522 = vadd.f32 %v1421, %v1490
        %v1523 = vadd.f32 %v1422, %v1491
        %v1524 = vadd.f32 %v1423, %v1492
        %v1525 = vadd.f32 %v1424, %v1493
        %v1526 = vadd.f32 %v1425, %v1494
        %v1527 = vadd.f32 %v1426, %v1495
        %v1528 = vadd.f32 %v1427, %v1496
        %v1529 = vadd.f32 %v1428, %v1497
        %v1530 = vadd.f32 %v1429, %v1498
        %v1531 = vadd.f32 %v1430, %v1499
        %v1532 = vadd.f32 %v1431, %v1500
        %v1533 = vadd.f32 %v1432, %v1501
        %v1534 = vadd.f32 %v1433, %v1502
        %v1535 = vadd.f32 %v1434, %v1503
        %v1536 = vadd.f32 %v1435, %v1504
        %v1537 = vadd.f32 %v1436, %v1505
        %v1538 = vadd.f32 %v1437, %v1506
        %v1539 = vadd.f32 %v1438, %v1507
        %v1540 = vadd.f32 %v1439, %v1508
        %v1541 = vadd.f32 %v1440, %v1509
        %v1542 = vadd.f32 %v1441, %v1510
        %v1543 = vld [vmem:[%s1442 + $0x1] sm:$0xff]
        %v1544 = vld [vmem:[%s1442 + $0x9] sm:$0xff]
        %v1545 = vld [vmem:[%s1442 + $0x19] sm:$0xff]
        %v1546 = vld [vmem:[%s1442 + $0x21] sm:$0xff]
        %v1547 = vld [vmem:[%s1442 + $0x31] sm:$0xff]
        %v1548 = vld [vmem:[%s1442 + $0x39] sm:$0xff]
        %v1549 = vld [vmem:[%s1442 + $0x49] sm:$0xff]
        %v1550 = vld [vmem:[%s1442 + $0x51] sm:$0xff]
        %v1551 = vld [vmem:[%s1442 + $0x61] sm:$0xff]
        %v1552 = vld [vmem:[%s1442 + $0x69] sm:$0xff]
        %v1553 = vld [vmem:[%s1442 + $0x79] sm:$0xff]
        %v1554 = vld [vmem:[%s1442 + $0x81] sm:$0xff]
        %v1555 = vld [vmem:[%s1442 + $0x91] sm:$0xff]
        %v1556 = vld [vmem:[%s1442 + $0x99] sm:$0xff]
        %v1557 = vld [vmem:[%s1442 + $0xa9] sm:$0xff]
        %v1558 = vld [vmem:[%s1442 + $0xb1] sm:$0xff]
        %v1559 = vld [vmem:[%s1442 + $0xc1] sm:$0xff]
        %v1560 = vld [vmem:[%s1442 + $0xc9] sm:$0xff]
        %v1561 = vld [vmem:[%s1442 + $0xd9] sm:$0xff]
        %v1562 = vld [vmem:[%s1442 + $0xe1] sm:$0xff]
        %v1563 = vld [vmem:[%s1442 + $0xf1] sm:$0xff]
        %v1564 = vld [vmem:[%s1442 + $0xf9] sm:$0xff]
        %v1565 = vld [vmem:[%s1442 + $0x109] sm:$0xff]
        %v1566 = vld [vmem:[%s1442 + $0x111] sm:$0xff]
        %v1567 = vld [vmem:[%s1442 + $0x121] sm:$0xff]
        %v1568 = vld [vmem:[%s1442 + $0x129] sm:$0xff]
        %v1569 = vld [vmem:[%s1442 + $0x139] sm:$0xff]
        %v1570 = vld [vmem:[%s1442 + $0x141] sm:$0xff]
        %v1571 = vld [vmem:[%s1442 + $0x151] sm:$0xff]
        %v1572 = vld [vmem:[%s1442 + $0x159] sm:$0xff]
        %v1573 = vld [vmem:[%s1442 + $0x169] sm:$0xff]
        %v1574 = vld [vmem:[%s1442 + $0x171] sm:$0xff]
        %v1575 = vlaneseq
        %v1576 = vshrl.u32 %v1575, 7
        %v1577 = vsub.s32 1, %v1576
        %v1578 = vrot.slane %v841, %v1577
        %v1579 = vmul.f32 %v1543, %v1578
        %v1580 = vmul.f32 %v1544, %v1578
        %v1581 = vmul.f32 %v1545, %v1578
        %v1582 = vmul.f32 %v1546, %v1578
        %v1583 = vmul.f32 %v1547, %v1578
        %v1584 = vmul.f32 %v1548, %v1578
        %v1585 = vmul.f32 %v1549, %v1578
        %v1586 = vmul.f32 %v1550, %v1578
        %v1587 = vmul.f32 %v1551, %v1578
        %v1588 = vmul.f32 %v1552, %v1578
        %v1589 = vmul.f32 %v1553, %v1578
        %v1590 = vmul.f32 %v1554, %v1578
        %v1591 = vmul.f32 %v1555, %v1578
        %v1592 = vmul.f32 %v1556, %v1578
        %v1593 = vmul.f32 %v1557, %v1578
        %v1594 = vmul.f32 %v1558, %v1578
        %v1595 = vmul.f32 %v1559, %v1578
        %v1596 = vmul.f32 %v1560, %v1578
        %v1597 = vmul.f32 %v1561, %v1578
        %v1598 = vmul.f32 %v1562, %v1578
        %v1599 = vmul.f32 %v1563, %v1578
        %v1600 = vmul.f32 %v1564, %v1578
        %v1601 = vmul.f32 %v1565, %v1578
        %v1602 = vmul.f32 %v1566, %v1578
        %v1603 = vmul.f32 %v1567, %v1578
        %v1604 = vmul.f32 %v1568, %v1578
        %v1605 = vmul.f32 %v1569, %v1578
        %v1606 = vmul.f32 %v1570, %v1578
        %v1607 = vmul.f32 %v1571, %v1578
        %v1608 = vmul.f32 %v1572, %v1578
        %v1609 = vmul.f32 %v1573, %v1578
        %v1610 = vmul.f32 %v1574, %v1578
        %v1611 = vadd.f32 %v1511, %v1579
        %v1612 = vadd.f32 %v1512, %v1580
        %v1613 = vadd.f32 %v1513, %v1581
        %v1614 = vadd.f32 %v1514, %v1582
        %v1615 = vadd.f32 %v1515, %v1583
        %v1616 = vadd.f32 %v1516, %v1584
        %v1617 = vadd.f32 %v1517, %v1585
        %v1618 = vadd.f32 %v1518, %v1586
        %v1619 = vadd.f32 %v1519, %v1587
        %v1620 = vadd.f32 %v1520, %v1588
        %v1621 = vadd.f32 %v1521, %v1589
        %v1622 = vadd.f32 %v1522, %v1590
        %v1623 = vadd.f32 %v1523, %v1591
        %v1624 = vadd.f32 %v1524, %v1592
        %v1625 = vadd.f32 %v1525, %v1593
        %v1626 = vadd.f32 %v1526, %v1594
        %v1627 = vadd.f32 %v1527, %v1595
        %v1628 = vadd.f32 %v1528, %v1596
        %v1629 = vadd.f32 %v1529, %v1597
        %v1630 = vadd.f32 %v1530, %v1598
        %v1631 = vadd.f32 %v1531, %v1599
        %v1632 = vadd.f32 %v1532, %v1600
        %v1633 = vadd.f32 %v1533, %v1601
        %v1634 = vadd.f32 %v1534, %v1602
        %v1635 = vadd.f32 %v1535, %v1603
        %v1636 = vadd.f32 %v1536, %v1604
        %v1637 = vadd.f32 %v1537, %v1605
        %v1638 = vadd.f32 %v1538, %v1606
        %v1639 = vadd.f32 %v1539, %v1607
        %v1640 = vadd.f32 %v1540, %v1608
        %v1641 = vadd.f32 %v1541, %v1609
        %v1642 = vadd.f32 %v1542, %v1610
        %v1643 = vld [vmem:[%s1442 + $0x2] sm:$0xff]
        %v1644 = vld [vmem:[%s1442 + $0xa] sm:$0xff]
        %v1645 = vld [vmem:[%s1442 + $0x1a] sm:$0xff]
        %v1646 = vld [vmem:[%s1442 + $0x22] sm:$0xff]
        %v1647 = vld [vmem:[%s1442 + $0x32] sm:$0xff]
        %v1648 = vld [vmem:[%s1442 + $0x3a] sm:$0xff]
        %v1649 = vld [vmem:[%s1442 + $0x4a] sm:$0xff]
        %v1650 = vld [vmem:[%s1442 + $0x52] sm:$0xff]
        %v1651 = vld [vmem:[%s1442 + $0x62] sm:$0xff]
        %v1652 = vld [vmem:[%s1442 + $0x6a] sm:$0xff]
        %v1653 = vld [vmem:[%s1442 + $0x7a] sm:$0xff]
        %v1654 = vld [vmem:[%s1442 + $0x82] sm:$0xff]
        %v1655 = vld [vmem:[%s1442 + $0x92] sm:$0xff]
        %v1656 = vld [vmem:[%s1442 + $0x9a] sm:$0xff]
        %v1657 = vld [vmem:[%s1442 + $0xaa] sm:$0xff]
        %v1658 = vld [vmem:[%s1442 + $0xb2] sm:$0xff]
        %v1659 = vld [vmem:[%s1442 + $0xc2] sm:$0xff]
        %v1660 = vld [vmem:[%s1442 + $0xca] sm:$0xff]
        %v1661 = vld [vmem:[%s1442 + $0xda] sm:$0xff]
        %v1662 = vld [vmem:[%s1442 + $0xe2] sm:$0xff]
        %v1663 = vld [vmem:[%s1442 + $0xf2] sm:$0xff]
        %v1664 = vld [vmem:[%s1442 + $0xfa] sm:$0xff]
        %v1665 = vld [vmem:[%s1442 + $0x10a] sm:$0xff]
        %v1666 = vld [vmem:[%s1442 + $0x112] sm:$0xff]
        %v1667 = vld [vmem:[%s1442 + $0x122] sm:$0xff]
        %v1668 = vld [vmem:[%s1442 + $0x12a] sm:$0xff]
        %v1669 = vld [vmem:[%s1442 + $0x13a] sm:$0xff]
        %v1670 = vld [vmem:[%s1442 + $0x142] sm:$0xff]
        %v1671 = vld [vmem:[%s1442 + $0x152] sm:$0xff]
        %v1672 = vld [vmem:[%s1442 + $0x15a] sm:$0xff]
        %v1673 = vld [vmem:[%s1442 + $0x16a] sm:$0xff]
        %v1674 = vld [vmem:[%s1442 + $0x172] sm:$0xff]
        %v1675 = vlaneseq
        %v1676 = vshrl.u32 %v1675, 7
        %v1677 = vsub.s32 2, %v1676
        %v1678 = vrot.slane %v841, %v1677
        %v1679 = vmul.f32 %v1643, %v1678
        %v1680 = vmul.f32 %v1644, %v1678
        %v1681 = vmul.f32 %v1645, %v1678
        %v1682 = vmul.f32 %v1646, %v1678
        %v1683 = vmul.f32 %v1647, %v1678
        %v1684 = vmul.f32 %v1648, %v1678
        %v1685 = vmul.f32 %v1649, %v1678
        %v1686 = vmul.f32 %v1650, %v1678
        %v1687 = vmul.f32 %v1651, %v1678
        %v1688 = vmul.f32 %v1652, %v1678
        %v1689 = vmul.f32 %v1653, %v1678
        %v1690 = vmul.f32 %v1654, %v1678
        %v1691 = vmul.f32 %v1655, %v1678
        %v1692 = vmul.f32 %v1656, %v1678
        %v1693 = vmul.f32 %v1657, %v1678
        %v1694 = vmul.f32 %v1658, %v1678
        %v1695 = vmul.f32 %v1659, %v1678
        %v1696 = vmul.f32 %v1660, %v1678
        %v1697 = vmul.f32 %v1661, %v1678
        %v1698 = vmul.f32 %v1662, %v1678
        %v1699 = vmul.f32 %v1663, %v1678
        %v1700 = vmul.f32 %v1664, %v1678
        %v1701 = vmul.f32 %v1665, %v1678
        %v1702 = vmul.f32 %v1666, %v1678
        %v1703 = vmul.f32 %v1667, %v1678
        %v1704 = vmul.f32 %v1668, %v1678
        %v1705 = vmul.f32 %v1669, %v1678
        %v1706 = vmul.f32 %v1670, %v1678
        %v1707 = vmul.f32 %v1671, %v1678
        %v1708 = vmul.f32 %v1672, %v1678
        %v1709 = vmul.f32 %v1673, %v1678
        %v1710 = vmul.f32 %v1674, %v1678
        %v1711 = vadd.f32 %v1611, %v1679
        %v1712 = vadd.f32 %v1612, %v1680
        %v1713 = vadd.f32 %v1613, %v1681
        %v1714 = vadd.f32 %v1614, %v1682
        %v1715 = vadd.f32 %v1615, %v1683
        %v1716 = vadd.f32 %v1616, %v1684
        %v1717 = vadd.f32 %v1617, %v1685
        %v1718 = vadd.f32 %v1618, %v1686
        %v1719 = vadd.f32 %v1619, %v1687
        %v1720 = vadd.f32 %v1620, %v1688
        %v1721 = vadd.f32 %v1621, %v1689
        %v1722 = vadd.f32 %v1622, %v1690
        %v1723 = vadd.f32 %v1623, %v1691
        %v1724 = vadd.f32 %v1624, %v1692
        %v1725 = vadd.f32 %v1625, %v1693
        %v1726 = vadd.f32 %v1626, %v1694
        %v1727 = vadd.f32 %v1627, %v1695
        %v1728 = vadd.f32 %v1628, %v1696
        %v1729 = vadd.f32 %v1629, %v1697
        %v1730 = vadd.f32 %v1630, %v1698
        %v1731 = vadd.f32 %v1631, %v1699
        %v1732 = vadd.f32 %v1632, %v1700
        %v1733 = vadd.f32 %v1633, %v1701
        %v1734 = vadd.f32 %v1634, %v1702
        %v1735 = vadd.f32 %v1635, %v1703
        %v1736 = vadd.f32 %v1636, %v1704
        %v1737 = vadd.f32 %v1637, %v1705
        %v1738 = vadd.f32 %v1638, %v1706
        %v1739 = vadd.f32 %v1639, %v1707
        %v1740 = vadd.f32 %v1640, %v1708
        %v1741 = vadd.f32 %v1641, %v1709
        %v1742 = vadd.f32 %v1642, %v1710
        %v1743 = vld [vmem:[%s4] sm:$0x1]
        %v1745 = vlaneseq
        %v1746 = vshrl.u32 %v1745, 7
        %v1747 = vsub.s32 0, %v1746
        %v1748 = vrot.slane %v1743, %v1747
        %v1750 = vadd.f32 %v1711, %v1748
        %v1751 = vadd.f32 %v1712, %v1748
        %v1752 = vadd.f32 %v1713, %v1748
        %v1753 = vadd.f32 %v1714, %v1748
        %v1754 = vadd.f32 %v1715, %v1748
        %v1755 = vadd.f32 %v1716, %v1748
        %v1756 = vadd.f32 %v1717, %v1748
        %v1757 = vadd.f32 %v1718, %v1748
        %v1758 = vadd.f32 %v1719, %v1748
        %v1759 = vadd.f32 %v1720, %v1748
        %v1760 = vadd.f32 %v1721, %v1748
        %v1761 = vadd.f32 %v1722, %v1748
        %v1762 = vadd.f32 %v1723, %v1748
        %v1763 = vadd.f32 %v1724, %v1748
        %v1764 = vadd.f32 %v1725, %v1748
        %v1765 = vadd.f32 %v1726, %v1748
        %v1766 = vadd.f32 %v1727, %v1748
        %v1767 = vadd.f32 %v1728, %v1748
        %v1768 = vadd.f32 %v1729, %v1748
        %v1769 = vadd.f32 %v1730, %v1748
        %v1770 = vadd.f32 %v1731, %v1748
        %v1771 = vadd.f32 %v1732, %v1748
        %v1772 = vadd.f32 %v1733, %v1748
        %v1773 = vadd.f32 %v1734, %v1748
        %v1774 = vadd.f32 %v1735, %v1748
        %v1775 = vadd.f32 %v1736, %v1748
        %v1776 = vadd.f32 %v1737, %v1748
        %v1777 = vadd.f32 %v1738, %v1748
        %v1778 = vadd.f32 %v1739, %v1748
        %v1779 = vadd.f32 %v1740, %v1748
        %v1780 = vadd.f32 %v1741, %v1748
        %v1781 = vadd.f32 %v1742, %v1748
        %v1782 = vmax.f32 %v1750, 0.0
        %v1783 = vmax.f32 %v1751, 0.0
        %v1784 = vmax.f32 %v1752, 0.0
        %v1785 = vmax.f32 %v1753, 0.0
        %v1786 = vmax.f32 %v1754, 0.0
        %v1787 = vmax.f32 %v1755, 0.0
        %v1788 = vmax.f32 %v1756, 0.0
        %v1789 = vmax.f32 %v1757, 0.0
        %v1790 = vmax.f32 %v1758, 0.0
        %v1791 = vmax.f32 %v1759, 0.0
        %v1792 = vmax.f32 %v1760, 0.0
        %v1793 = vmax.f32 %v1761, 0.0
        %v1794 = vmax.f32 %v1762, 0.0
        %v1795 = vmax.f32 %v1763, 0.0
        %v1796 = vmax.f32 %v1764, 0.0
        %v1797 = vmax.f32 %v1765, 0.0
        %v1798 = vmax.f32 %v1766, 0.0
        %v1799 = vmax.f32 %v1767, 0.0
        %v1800 = vmax.f32 %v1768, 0.0
        %v1801 = vmax.f32 %v1769, 0.0
        %v1802 = vmax.f32 %v1770, 0.0
        %v1803 = vmax.f32 %v1771, 0.0
        %v1804 = vmax.f32 %v1772, 0.0
        %v1805 = vmax.f32 %v1773, 0.0
        %v1806 = vmax.f32 %v1774, 0.0
        %v1807 = vmax.f32 %v1775, 0.0
        %v1808 = vmax.f32 %v1776, 0.0
        %v1809 = vmax.f32 %v1777, 0.0
        %v1810 = vmax.f32 %v1778, 0.0
        %v1811 = vmax.f32 %v1779, 0.0
        %v1812 = vmax.f32 %v1780, 0.0
        %v1813 = vmax.f32 %v1781, 0.0
        %v1814 = vmin.f32 %v1782, 6.0
        %v1815 = vmin.f32 %v1783, 6.0
        %v1816 = vmin.f32 %v1784, 6.0
        %v1817 = vmin.f32 %v1785, 6.0
        %v1818 = vmin.f32 %v1786, 6.0
        %v1819 = vmin.f32 %v1787, 6.0
        %v1820 = vmin.f32 %v1788, 6.0
        %v1821 = vmin.f32 %v1789, 6.0
        %v1822 = vmin.f32 %v1790, 6.0
        %v1823 = vmin.f32 %v1791, 6.0
        %v1824 = vmin.f32 %v1792, 6.0
        %v1825 = vmin.f32 %v1793, 6.0
        %v1826 = vmin.f32 %v1794, 6.0
        %v1827 = vmin.f32 %v1795, 6.0
        %v1828 = vmin.f32 %v1796, 6.0
        %v1829 = vmin.f32 %v1797, 6.0
        %v1830 = vmin.f32 %v1798, 6.0
        %v1831 = vmin.f32 %v1799, 6.0
        %v1832 = vmin.f32 %v1800, 6.0
        %v1833 = vmin.f32 %v1801, 6.0
        %v1834 = vmin.f32 %v1802, 6.0
        %v1835 = vmin.f32 %v1803, 6.0
        %v1836 = vmin.f32 %v1804, 6.0
        %v1837 = vmin.f32 %v1805, 6.0
        %v1838 = vmin.f32 %v1806, 6.0
        %v1839 = vmin.f32 %v1807, 6.0
        %v1840 = vmin.f32 %v1808, 6.0
        %v1841 = vmin.f32 %v1809, 6.0
        %v1842 = vmin.f32 %v1810, 6.0
        %v1843 = vmin.f32 %v1811, 6.0
        %v1844 = vmin.f32 %v1812, 6.0
        %v1845 = vmin.f32 %v1813, 6.0
        %v1846 = vld [vmem:[%s5] sm:$0xff]
        %v1847 = vld [vmem:[%s6] sm:$0xff]
        %1849 = vset.pattern.permute.xlu0 0
        %1850 = vperm.xlu0 %1849, %v1847
        %v1851 = vpop.permute.xlu0 %1850
        %v1854 = vsel %vm324, %v1846, 0
        %v1857 = vsel %vm324, %v1814, 0
        %v1860 = vsel %vm324, %v1815, 0
        %v1863 = vsel %vm324, %v1816, 0
        %v1866 = vsel %vm324, %v1817, 0
        %v1869 = vsel %vm324, %v1818, 0
        %v1872 = vsel %vm324, %v1819, 0
        %v1875 = vsel %vm324, %v1820, 0
        %v1878 = vsel %vm324, %v1821, 0
        %v1881 = vsel %vm324, %v1822, 0
        %v1884 = vsel %vm324, %v1823, 0
        %v1887 = vsel %vm324, %v1824, 0
        %v1890 = vsel %vm324, %v1825, 0
        %v1893 = vsel %vm324, %v1826, 0
        %v1896 = vsel %vm324, %v1827, 0
        %v1899 = vsel %vm324, %v1828, 0
        %v1902 = vsel %vm324, %v1829, 0
        %v1905 = vsel %vm324, %v1830, 0
        %v1908 = vsel %vm324, %v1831, 0
        %v1911 = vsel %vm324, %v1832, 0
        %v1914 = vsel %vm324, %v1833, 0
        %v1917 = vsel %vm324, %v1834, 0
        %v1920 = vsel %vm324, %v1835, 0
        %v1923 = vsel %vm324, %v1836, 0
        %v1926 = vsel %vm324, %v1837, 0
        %v1929 = vsel %vm324, %v1838, 0
        %v1932 = vsel %vm324, %v1839, 0
        %v1935 = vsel %vm324, %v1840, 0
        %v1938 = vsel %vm324, %v1841, 0
        %v1941 = vsel %vm324, %v1842, 0
        %v1944 = vsel %vm324, %v1843, 0
        %v1947 = vsel %vm324, %v1844, 0
        %v1950 = vsel %vm324, %v1845, 0
        %1952 = vmatprep.subr.mxu0 0.0
        %1953 = vmatpush1.xpose.msra.mxu0 %v1902
        %1954 = vmatprep.subr.mxu0 0.0
        %1955 = vmatpush1.xpose.msra.mxu0 %v1899
        %1956 = vmatprep.subr.mxu0 0.0
        %1957 = vmatpush1.xpose.msra.mxu0 %v1896
        %1958 = vmatprep.subr.mxu0 0.0
        %1959 = vmatpush1.xpose.msra.mxu0 %v1893
        %1960 = vmatprep.subr.mxu0 0.0
        %1961 = vmatpush1.xpose.msra.mxu0 %v1890
        %1962 = vmatprep.subr.mxu0 0.0
        %1963 = vmatpush1.xpose.msra.mxu0 %v1887
        %1964 = vmatprep.subr.mxu0 0.0
        %1965 = vmatpush1.xpose.msra.mxu0 %v1884
        %1966 = vmatprep.subr.mxu0 0.0
        %1967 = vmatpush1.xpose.msra.mxu0 %v1881
        %1968 = vmatprep.subr.mxu0 0.0
        %1969 = vmatpush1.xpose.msra.mxu0 %v1878
        %1970 = vmatprep.subr.mxu0 0.0
        %1971 = vmatpush1.xpose.msra.mxu0 %v1875
        %1972 = vmatprep.subr.mxu0 0.0
        %1973 = vmatpush1.xpose.msra.mxu0 %v1872
        %1974 = vmatprep.subr.mxu0 0.0
        %1975 = vmatpush1.xpose.msra.mxu0 %v1869
        %1976 = vmatprep.subr.mxu0 0.0
        %1977 = vmatpush1.xpose.msra.mxu0 %v1866
        %1978 = vmatprep.subr.mxu0 0.0
        %1979 = vmatpush1.xpose.msra.mxu0 %v1863
        %1980 = vmatprep.subr.mxu0 0.0
        %1981 = vmatpush1.xpose.msra.mxu0 %v1860
        %1982 = vmatprep.subr.mxu0 0.0
        %1983 = vmatpush1.xpose.msra.mxu0 %v1857
        %1984 = vmatprep.subr.mxu0 0.0
        %1985 = vmatpush2.xpose.msra.mxu0 %v1950
        %1986 = vmatprep.subr.mxu0 0.0
        %1987 = vmatpush2.xpose.msra.mxu0 %v1947
        %1988 = vmatprep.subr.mxu0 0.0
        %1989 = vmatpush2.xpose.msra.mxu0 %v1944
        %1990 = vmatprep.subr.mxu0 0.0
        %1991 = vmatpush2.xpose.msra.mxu0 %v1941
        %1992 = vmatprep.subr.mxu0 0.0
        %1993 = vmatpush2.xpose.msra.mxu0 %v1938
        %1994 = vmatprep.subr.mxu0 0.0
        %1995 = vmatpush2.xpose.msra.mxu0 %v1935
        %1996 = vmatprep.subr.mxu0 0.0
        %1997 = vmatpush2.xpose.msra.mxu0 %v1932
        %1998 = vmatprep.subr.mxu0 0.0
        %1999 = vmatpush2.xpose.msra.mxu0 %v1929
        %2000 = vmatprep.subr.mxu0 0.0
        %2001 = vmatpush2.xpose.msra.mxu0 %v1926
        %2002 = vmatprep.subr.mxu0 0.0
        %2003 = vmatpush2.xpose.msra.mxu0 %v1923
        %2004 = vmatprep.subr.mxu0 0.0
        %2005 = vmatpush2.xpose.msra.mxu0 %v1920
        %2006 = vmatprep.subr.mxu0 0.0
        %2007 = vmatpush2.xpose.msra.mxu0 %v1917
        %2008 = vmatprep.subr.mxu0 0.0
        %2009 = vmatpush2.xpose.msra.mxu0 %v1914
        %2010 = vmatprep.subr.mxu0 0.0
        %2011 = vmatpush2.xpose.msra.mxu0 %v1911
        %2012 = vmatprep.subr.mxu0 0.0
        %2013 = vmatpush2.xpose.msra.mxu0 %v1908
        %2014 = vmatprep.subr.mxu0 0.0
        %2015 = vmatpush2.xpose.msra.mxu0 %v1905
        %2016 = vmatprep.mubr.f32.mxu0 0.0
        %2017 = vmatmul.mubr.f32.gmra.mxu0 %v1854
        %v2018 = vpop.f32.mrf.mxu0
        %v2019 = vadd.f32 %v1851, %v2018
        %v2020 = vpop.f32.mrf.mxu0
        %v2021 = vadd.f32 %v1851, %v2020
        %2022 = vdwg.mxu0
        %v2023 = vld [vmem:[%s323] sm:$0xff]
        %v2024 = vld [vmem:[%s323 + $0x8] sm:$0xff]
        %v2025 = vadd.f32 %v2019, %v2023
        %v2026 = vadd.f32 %v2021, %v2024
        %2027 = vst [vmem:[%s313] sm:$0xff] %v2025
        %2028 = vst [vmem:[%s313 + $0x8] sm:$0xff] %v2026
        %s2029 = sand.u32 %s208, 1
        %s2030 = scalar_lea.sflag [#allocation4], %s2029
        %s2031 = sand.u32 %s208, 1
        %s2032 = smul.addr %s2031, 16
        %s2033 = scalar_lea.vmem [#allocation3], %s2032
        // Predicated region
        $region53: #{tpu_custom_call.1} parent=51 // pred_check
          %p2034 = pneg %p218
        $region54: #{tpu_custom_call.1} parent=51 // pred_check_branch
          %2036 = sbr.rel (%p2034) target = $region56
        $region55: #{tpu_custom_call.1} parent=51 // pred_region
          %s2038 = ssub.s32 256, 256
          %2039 = vsyncadd %s2030, %s2038
          %s2040 = smul.addr %s22, 2
          %s2041 = smul.addr %s2040, 128
          %s2042 = scalar_lea.hbm %s8, %s2041
          %s2044 = sshll.u32 %s2033, 4
          %s2045 = int_to_ptr.vmem [resolvable:$true] %s2044
          %2047 = dma.vmem_to_hbm [thread:$0]  %s2045, 256, %s2042, %s2030
        $region56: #{tpu_custom_call.1} parent=51 // pred_fallthru
          _
      $region52: #{tpu_custom_call.1} parent=5 // pred_fallthru
        _
      %p2048 = scmp.le.s32.totalorder 2, %s17
      // Predicated region
      $region57: #{tpu_custom_call.1} parent=5 // pred_check
        %p2049 = pneg %p2048
      $region58: #{tpu_custom_call.1} parent=5 // pred_check_branch
        %2051 = sbr.rel (%p2049) target = $region60
      $region59: #{tpu_custom_call.1} parent=5 // pred_region
        %s2052 = ssub.s32 %s17, 2
        // Predicated region
        $region61: #{tpu_custom_call.1} parent=59 // pred_check
          %p2053 = pneg %p224
        $region62: #{tpu_custom_call.1} parent=59 // pred_check_branch
          %2055 = sbr.rel (%p2053) target = $region64
        $region63: #{tpu_custom_call.1} parent=59 // pred_region
          %s2056 = sand.u32 %s209, 1
          %s2057 = scalar_lea.sflag [#allocation4], %s2056
          %s2058 = sand.u32 %s209, 1
          %s2059 = smul.addr %s2058, 16
          %s2060 = scalar_lea.vmem [#allocation3], %s2059
          %2061 = dma.done %s2057, 256
        $region64: #{tpu_custom_call.1} parent=59 // pred_fallthru
          _
      $region60: #{tpu_custom_call.1} parent=5 // pred_fallthru
        _
    $region6: #{tpu_custom_call.1} parent=1 // loop_footer
      %s21 = sadd.s32 1, %s17
    $region7: #{tpu_custom_call.1} parent=1 // loop_footer_branch
      %16 = sbr.rel target = $region3
    $region8: #{tpu_custom_call.1} parent=1 // loop_exit
      _
    %2062 = vsyncpa [#allocation4], 1
    %s2063 = scalar_lea.sflag [#allocation4], 1
    %2064 = vsyncpa %s2063, 1

</llo_original>
